<compile_context>
chip_gen: v6e
topology: v6e:2x2x1
jax: 0.10.0
libtpu: 0.0.40
codegen_flags: <defaults>
</compile_context>

<pallas_src>
import functools

import jax
import jax.numpy as jnp
from jax.experimental import pallas as pl
from jax.experimental.pallas import tpu as pltpu


def _round_up(x, m):
    return ((x + m - 1) // m) * m


# --------------------------------------------------------------------- fused matmul
# O = epilogue(A @ B), epilogue = per-column affine (BN) -> optional PReLU ->
# optional residual add.  A, B tiles are bf16; accumulation f32; epilogue and
# the single output store happen only on the last K grid step.
def _make_matmul_kernel(has_alpha, has_res):
    def kernel(*refs):
        it = iter(refs)
        a_ref = next(it)
        b_ref = next(it)
        s_ref = next(it)
        t_ref = next(it)
        al_ref = next(it) if has_alpha else None
        r_ref = next(it) if has_res else None
        o_ref = next(it)
        acc_ref = next(it)

        k = pl.program_id(2)

        @pl.when(k == 0)
        def _():
            acc_ref[...] = jnp.zeros_like(acc_ref)

        acc_ref[...] += jnp.dot(a_ref[...], b_ref[...],
                                preferred_element_type=jnp.float32)

        @pl.when(k == pl.num_programs(2) - 1)
        def _():
            y = acc_ref[...] * s_ref[...] + t_ref[...]
            if has_alpha:
                y = jnp.where(y >= 0, y, al_ref[...] * y)
            if has_res:
                y = y + r_ref[...]
            o_ref[...] = y.astype(o_ref.dtype)

    return kernel


@jax.jit
def matmul_fused(a, b, scale, shift, alpha=None, residual=None):
    """(M,K)@(K,N) on the MXU in bf16 with fused per-column affine/PReLU/residual."""
    M, K = a.shape
    K2, N = b.shape
    assert K == K2

    tm = min(512, _round_up(M, 8))
    Mp = _round_up(M, tm)
    tn = min(256, _round_up(N, 128))
    if Mp <= 64:                       # tiny-M (FC) path: big N/K tiles, few grid steps
        tn = min(768, _round_up(N, 128))
    Np = _round_up(N, tn)
    tk128 = _round_up(K, 128)
    tk = tk128 if tk128 <= 2048 else 512
    Kp = _round_up(K, tk)

    a_p = jnp.pad(a.astype(jnp.bfloat16), ((0, Mp - M), (0, Kp - K)))
    b_p = jnp.pad(b.astype(jnp.bfloat16), ((0, Kp - K), (0, Np - N)))
    s_p = jnp.pad(scale.astype(jnp.float32), (0, Np - N)).reshape(1, Np)
    t_p = jnp.pad(shift.astype(jnp.float32), (0, Np - N)).reshape(1, Np)

    args = [a_p, b_p, s_p, t_p]
    in_specs = [
        pl.BlockSpec((tm, tk), lambda i, j, k: (i, k)),
        pl.BlockSpec((tk, tn), lambda i, j, k: (k, j)),
        pl.BlockSpec((1, tn), lambda i, j, k: (0, j)),
        pl.BlockSpec((1, tn), lambda i, j, k: (0, j)),
    ]
    has_alpha = alpha is not None
    has_res = residual is not None
    if has_alpha:
        args.append(jnp.pad(alpha.astype(jnp.float32), (0, Np - N)).reshape(1, Np))
        in_specs.append(pl.BlockSpec((1, tn), lambda i, j, k: (0, j)))
    if has_res:
        args.append(jnp.pad(residual.astype(jnp.float32),
                            ((0, Mp - M), (0, Np - N))))
        in_specs.append(pl.BlockSpec((tm, tn), lambda i, j, k: (i, j)))

    out = pl.pallas_call(
        _make_matmul_kernel(has_alpha, has_res),
        out_shape=jax.ShapeDtypeStruct((Mp, Np), jnp.float32),
        grid=(Mp // tm, Np // tn, Kp // tk),
        in_specs=in_specs,
        out_specs=pl.BlockSpec((tm, tn), lambda i, j, k: (i, j)),
        scratch_shapes=[pltpu.VMEM((tm, tn), jnp.float32)],
        compiler_params=pltpu.CompilerParams(
            dimension_semantics=("parallel", "parallel", "arbitrary")),
    )(*args)
    return out[:M, :N]


# --------------------------------------------------------------------- standalone BN
def _affine_kernel(x_ref, s_ref, b_ref, o_ref):
    o_ref[...] = x_ref[...] * s_ref[...] + b_ref[...]


@jax.jit
def bn_affine2d(x2d, scale, shift):
    """Per-channel y = x * scale + shift over an (M, C) activation."""
    M0, C0 = x2d.shape
    x = x2d.astype(jnp.float32)
    scale = scale.astype(jnp.float32)
    shift = shift.astype(jnp.float32)
    # lane-dense folding for narrow channel counts (avoid masked partial stores)
    if C0 < 128 and 128 % C0 == 0 and M0 % (128 // C0) == 0:
        fold = 128 // C0
        x = x.reshape(M0 // fold, C0 * fold)
        scale = jnp.tile(scale, fold)
        shift = jnp.tile(shift, fold)
    M, C = x.shape
    rows = max(256, (1 << 20) // (4 * C))              # ~1 MiB x-tiles
    tm = _round_up(min(M, rows), 8)
    Mp = _round_up(M, tm)
    x_p = jnp.pad(x, ((0, Mp - M), (0, 0)))
    out = pl.pallas_call(
        _affine_kernel,
        out_shape=jax.ShapeDtypeStruct((Mp, C), jnp.float32),
        grid=(Mp // tm,),
        in_specs=[pl.BlockSpec((tm, C), lambda i: (i, 0)),
                  pl.BlockSpec((1, C), lambda i: (0, 0)),
                  pl.BlockSpec((1, C), lambda i: (0, 0))],
        out_specs=pl.BlockSpec((tm, C), lambda i: (i, 0)),
        compiler_params=pltpu.CompilerParams(dimension_semantics=("parallel",)),
    )(x_p, scale.reshape(1, C), shift.reshape(1, C))
    return out[:M].reshape(M0, C0)


# --------------------------------------------------------------------- L2 normalize
def _l2norm_kernel(x_ref, o_ref):
    x = x_ref[...]
    ssq = jnp.sum(x * x, axis=-1, keepdims=True)
    o_ref[...] = x * jax.lax.rsqrt(jnp.maximum(ssq, 1e-24))


@jax.jit
def l2_normalize_pallas(x):
    M, C = x.shape
    return pl.pallas_call(
        _l2norm_kernel,
        out_shape=jax.ShapeDtypeStruct((M, C), jnp.float32),
        grid=(1,),
        in_specs=[pl.BlockSpec((M, C), lambda i: (0, 0))],
        out_specs=pl.BlockSpec((M, C), lambda i: (0, 0)),
    )(x.astype(jnp.float32))


# --------------------------------------------------------------------- conv = im2col + fused matmul
@functools.partial(jax.jit, static_argnames=("stride",))
def conv2d_fused(x, w_torch, scale, shift, alpha=None, residual2d=None, *, stride):
    """NHWC conv (PyTorch padding: 1 for 3x3, 0 for 1x1) with the BN / PReLU /
    residual epilogue fused into the Pallas MXU matmul.  x:(N,H,W,Cin),
    w_torch:(Cout,Cin,kh,kw), no conv bias."""
    N, H, W, Cin = x.shape
    Cout, _, kh, kw = w_torch.shape
    pad = (kh - 1) // 2
    Ho = (H + 2 * pad - kh) // stride + 1
    Wo = (W + 2 * pad - kw) // stride + 1
    xb = x.astype(jnp.bfloat16)
    if kh == 1 and kw == 1:
        patches = xb[:, ::stride, ::stride, :].reshape(N * Ho * Wo, Cin)
    else:
        xp = jnp.pad(xb, ((0, 0), (pad, pad), (pad, pad), (0, 0)))
        cols = []
        for dh in range(kh):
            for dw in range(kw):
                cols.append(xp[:, dh:dh + stride * (Ho - 1) + 1:stride,
                                dw:dw + stride * (Wo - 1) + 1:stride, :])
        patches = jnp.concatenate(cols, axis=-1).reshape(N * Ho * Wo, kh * kw * Cin)
    wmat = jnp.transpose(w_torch, (2, 3, 1, 0)).reshape(kh * kw * Cin, Cout)
    out = matmul_fused(patches, wmat.astype(jnp.bfloat16), scale, shift,
                       alpha=alpha, residual=residual2d)
    return out.reshape(N, Ho, Wo, Cout)


# --------------------------------------------------------------------- parameters
def _get_blocks_cfg(num_layers):
    def get_block(in_c, depth, n, stride=2):
        return [(in_c, depth, stride)] + [(depth, depth, 1)] * (n - 1)
    if num_layers == 50:
        cfg = (get_block(64, 64, 3) + get_block(64, 128, 4) +
               get_block(128, 256, 14) + get_block(256, 512, 3))
    elif num_layers == 100:
        cfg = (get_block(64, 64, 3) + get_block(64, 128, 13) +
               get_block(128, 256, 30) + get_block(256, 512, 3))
    elif num_layers == 152:
        cfg = (get_block(64, 64, 3) + get_block(64, 128, 8) +
               get_block(128, 256, 36) + get_block(256, 512, 3))
    else:
        raise ValueError("num_layers should be 50, 100 or 152")
    return cfg


def init_backbone_params(key, num_layers=50, fc_spatial=16):
    key_holder = [key]

    def nxt():
        key_holder[0], sub = jax.random.split(key_holder[0])
        return sub

    def conv_w(cout, cin, k):
        fan_in = cin * k * k
        return jax.random.normal(nxt(), (cout, cin, k, k), jnp.float32) * (0.5 / jnp.sqrt(fan_in))

    def bn(c):
        return {"gamma": 1.0 + 0.1 * jax.random.normal(nxt(), (c,), jnp.float32),
                "beta": 0.05 * jax.random.normal(nxt(), (c,), jnp.float32),
                "mean": jnp.zeros((c,), jnp.float32),
                "var": jnp.ones((c,), jnp.float32)}

    def prelu(c):
        return jnp.full((c,), 0.25, jnp.float32)   # PyTorch PReLU default init

    params = {"input": {"conv_w": conv_w(64, 3, 3), "bn": bn(64), "prelu": prelu(64)}}

    body = []
    for (in_c, depth, stride) in _get_blocks_cfg(num_layers):
        p = {"stride": stride,
             "bn1": bn(in_c),
             "conv1_w": conv_w(depth, in_c, 3),
             "prelu": prelu(depth),
             "conv2_w": conv_w(depth, depth, 3),
             "bn2": bn(depth)}
        if in_c != depth:
            p["short_conv_w"] = conv_w(depth, in_c, 1)
            p["short_bn"] = bn(depth)
        body.append(p)
    params["body"] = body

    # canonical module: Linear(512*16*16, .) i.e. fc_spatial=16 (256x256 input);
    # FC weights stored pre-transposed (K, N) so the Pallas matmul reads them
    # without an HBM transpose.
    fc_in = 512 * fc_spatial * fc_spatial
    params["out"] = {
        "bn2": bn(512),
        "fc_feat_w_t": jax.random.normal(nxt(), (fc_in, 512), jnp.float32) / jnp.sqrt(fc_in),
        "fc_feat_b": 0.01 * jax.random.normal(nxt(), (512,), jnp.float32),
        "fc_cls_w_t": jax.random.normal(nxt(), (fc_in, 2), jnp.float32) / jnp.sqrt(fc_in),
        "fc_cls_b": 0.01 * jax.random.normal(nxt(), (2,), jnp.float32),
        "bn_feat": bn(512),
        "bn_cls": bn(2),
    }
    return params


def _bn_scale_shift(bn, eps=1e-5):
    inv = 1.0 / jnp.sqrt(bn["var"] + eps)
    scale = bn["gamma"] * inv
    shift = bn["beta"] - bn["mean"] * scale
    return scale, shift


# --------------------------------------------------------------------- forward
def _bottleneck_ir_forward(p, x):
    """bottleneck_IR: shortcut + (BN -> conv3x3 -> PReLU -> conv3x3(stride) -> BN)."""
    N, H, W, in_c = x.shape
    depth = p["conv1_w"].shape[0]
    stride = p["stride"]

    # shortcut
    if "short_conv_w" in p:
        ss, sb = _bn_scale_shift(p["short_bn"])
        sc4 = conv2d_fused(x, p["short_conv_w"], ss, sb, stride=stride)   # conv1x1 + BN
        shortcut2d = sc4.reshape(-1, depth)
    else:
        shortcut2d = x[:, ::stride, ::stride, :].reshape(-1, in_c)        # MaxPool2d(1, s)

    # residual branch
    s1, b1 = _bn_scale_shift(p["bn1"])
    r = bn_affine2d(x.reshape(-1, in_c), s1, b1).reshape(N, H, W, in_c)
    ones = jnp.ones((depth,), jnp.float32)
    zeros = jnp.zeros((depth,), jnp.float32)
    r = conv2d_fused(r, p["conv1_w"], ones, zeros, alpha=p["prelu"], stride=1)
    s2, b2 = _bn_scale_shift(p["bn2"])
    out = conv2d_fused(r, p["conv2_w"], s2, b2, residual2d=shortcut2d, stride=stride)
    return out


def backbone_forward(params, x_nchw):
    # external NCHW (PyTorch) -> internal NHWC
    x = jnp.transpose(x_nchw, (0, 2, 3, 1)).astype(jnp.float32)

    # input layer: conv3x3 -> BN -> PReLU (fused epilogue)
    s, b = _bn_scale_shift(params["input"]["bn"])
    x = conv2d_fused(x, params["input"]["conv_w"], s, b,
                     alpha=params["input"]["prelu"], stride=1)

    # body
    for blk in params["body"]:
        x = _bottleneck_ir_forward(blk, x)

    # output layer
    out = params["out"]
    N, H, W, C = x.shape
    s, b = _bn_scale_shift(out["bn2"])
    x2d = bn_affine2d(x.reshape(-1, C), s, b)
    # TODO(synk): nn.Dropout replicated in eval mode only (identity); training-mode RNG drop not implemented.
    x = x2d.reshape(N, H, W, C)
    flat = jnp.transpose(x, (0, 3, 1, 2)).reshape(N, -1)   # PyTorch NCHW flatten order

    # fc_feat and fc_cls fused into one matmul; BatchNorm1d (and the Linear bias)
    # folded into the per-column scale/shift epilogue.
    sf, shf = _bn_scale_shift(out["bn_feat"])
    sc, shc = _bn_scale_shift(out["bn_cls"])
    w_cat = jnp.concatenate([out["fc_feat_w_t"], out["fc_cls_w_t"]], axis=1)
    scale_cat = jnp.concatenate([sf, sc])
    shift_cat = jnp.concatenate([sf * out["fc_feat_b"] + shf,
                                 sc * out["fc_cls_b"] + shc])
    y = matmul_fused(flat, w_cat, scale_cat, shift_cat)
    feat, cls = y[:, :512], y[:, 512:514]

    # F.normalize(x_feat, p=2, dim=1)
    feat = l2_normalize_pallas(feat)
    return feat, cls


# --------------------------------------------------------------------- main
if __name__ == "__main__":
    key = jax.random.PRNGKey(0)
    pkey, xkey = jax.random.split(key)

    # Scaled-down test input: the canonical ArcFace input is (2, 3, 256, 256)
    # (flatten sees 512*16*16).  Here we use 32x32 so the full 24-block IR-50
    # body runs quickly in the sandbox; the FC input dim scales with the actual
    # final spatial size (512 * 2 * 2).
    IMG = 32
    params = init_backbone_params(pkey, num_layers=50, fc_spatial=IMG // 16)
    x = jax.random.normal(xkey, (2, 3, IMG, IMG), jnp.float32)

    feat, cls = backbone_forward(params, x)
    feat, cls = jax.block_until_ready((feat, cls))

    assert feat.shape == (2, 512), feat.shape
    assert cls.shape == (2, 2), cls.shape
    assert bool(jnp.all(jnp.isfinite(feat))) and bool(jnp.all(jnp.isfinite(cls)))
    norms = jnp.sqrt(jnp.sum(feat * feat, axis=1))
    assert bool(jnp.all(jnp.abs(norms - 1.0) < 1e-3))

    print("KERNEL_OK")
</pallas_src>

<mosaic_0001>
module attributes {stable_mosaic.version = 11 : i64} {
  func.func @kernel(%arg0: i32, %arg1: i32, %arg2: i32, %arg3: memref<512x128xbf16, #tpu.memory_space<vmem>>, %arg4: memref<128x128xbf16, #tpu.memory_space<vmem>>, %arg5: memref<1x128xf32, #tpu.memory_space<vmem>>, %arg6: memref<1x128xf32, #tpu.memory_space<vmem>>, %arg7: memref<1x128xf32, #tpu.memory_space<vmem>>, %arg8: memref<512x128xf32, #tpu.memory_space<vmem>>, %arg9: memref<512x128xf32, #tpu.memory_space<vmem>>) attributes {dimension_semantics = [#tpu.dimension_semantics<parallel>, #tpu.dimension_semantics<parallel>, #tpu.dimension_semantics<arbitrary>], iteration_bounds = array<i64: 4, 1, 1>, scalar_prefetch = 0 : i64, scratch_operands = 1 : i64, tpu.core_type = #tpu.core_type<tc>, window_params = [{transform_indices = @transform_0, window_bounds = array<i64: 512, 128>}, {transform_indices = @transform_1, window_bounds = array<i64: 128, 128>}, {transform_indices = @transform_2, window_bounds = array<i64: 1, 128>}, {transform_indices = @transform_3, window_bounds = array<i64: 1, 128>}, {transform_indices = @transform_4, window_bounds = array<i64: 1, 128>}, {transform_indices = @transform_5, window_bounds = array<i64: 512, 128>}]} {
    %c0_i32 = arith.constant 0 : i32
    %0 = arith.cmpi eq, %arg2, %c0_i32 : i32
    %1 = arith.extui %0 : i1 to i32
    %c0_i32_0 = arith.constant 0 : i32
    %2 = arith.cmpi ne, %1, %c0_i32_0 : i32
    scf.if %2 {
      %cst_10 = arith.constant 0.000000e+00 : f32
      %12 = vector.broadcast %cst_10 : f32 to vector<512x128xf32>
      %c0_11 = arith.constant 0 : index
      %c0_12 = arith.constant 0 : index
      %13 = vector.load %arg9[%c0_11, %c0_12] : memref<512x128xf32, #tpu.memory_space<vmem>>, vector<512x128xf32>
      tpu.vector_store %arg9[%c0_11, %c0_12], %12 {strides = array<i32>} : memref<512x128xf32, #tpu.memory_space<vmem>>, vector<512x128xf32>,
    } else {
    }
    %c0 = arith.constant 0 : index
    %c0_1 = arith.constant 0 : index
    %3 = vector.load %arg9[%c0, %c0_1] : memref<512x128xf32, #tpu.memory_space<vmem>>, vector<512x128xf32>
    %c0_2 = arith.constant 0 : index
    %c0_3 = arith.constant 0 : index
    %4 = vector.load %arg3[%c0_2, %c0_3] : memref<512x128xbf16, #tpu.memory_space<vmem>>, vector<512x128xbf16>
    %c0_4 = arith.constant 0 : index
    %c0_5 = arith.constant 0 : index
    %5 = vector.load %arg4[%c0_4, %c0_5] : memref<128x128xbf16, #tpu.memory_space<vmem>>, vector<128x128xbf16>
    %cst = arith.constant dense<0.000000e+00> : vector<512x128xf32>
    %6 = tpu.matmul %4, %5, %cst {dimension_numbers = #tpu.dot_dimension_numbers<[1], [0], [0], [1], [0, 0, 1, 1], [], []>} : vector<512x128xbf16>, vector<128x128xbf16>, vector<512x128xf32> -> vector<512x128xf32>
    %7 = arith.addf %3, %6 : vector<512x128xf32>
    %c0_6 = arith.constant 0 : index
    %c0_7 = arith.constant 0 : index
    %8 = vector.load %arg9[%c0_6, %c0_7] : memref<512x128xf32, #tpu.memory_space<vmem>>, vector<512x128xf32>
    tpu.vector_store %arg9[%c0_6, %c0_7], %7 {strides = array<i32>} : memref<512x128xf32, #tpu.memory_space<vmem>>, vector<512x128xf32>,
    %c0_i32_8 = arith.constant 0 : i32
    %9 = arith.cmpi eq, %arg2, %c0_i32_8 : i32
    %10 = arith.extui %9 : i1 to i32
    %c0_i32_9 = arith.constant 0 : i32
    %11 = arith.cmpi ne, %10, %c0_i32_9 : i32
    scf.if %11 {
      %c0_10 = arith.constant 0 : index
      %c0_11 = arith.constant 0 : index
      %12 = vector.load %arg9[%c0_10, %c0_11] : memref<512x128xf32, #tpu.memory_space<vmem>>, vector<512x128xf32>
      %c0_12 = arith.constant 0 : index
      %c0_13 = arith.constant 0 : index
      %13 = vector.load %arg5[%c0_12, %c0_13] : memref<1x128xf32, #tpu.memory_space<vmem>>, vector<1x128xf32>
      %14 = vector.broadcast %13 : vector<1x128xf32> to vector<512x128xf32>
      %15 = arith.mulf %12, %14 : vector<512x128xf32>
      %c0_14 = arith.constant 0 : index
      %c0_15 = arith.constant 0 : index
      %16 = vector.load %arg6[%c0_14, %c0_15] : memref<1x128xf32, #tpu.memory_space<vmem>>, vector<1x128xf32>
      %17 = vector.broadcast %16 : vector<1x128xf32> to vector<512x128xf32>
      %18 = arith.addf %15, %17 : vector<512x128xf32>
      %cst_16 = arith.constant 0.000000e+00 : f32
      %19 = vector.broadcast %cst_16 : f32 to vector<512x128xf32>
      %20 = arith.cmpf oge, %18, %19 : vector<512x128xf32>
      %c0_17 = arith.constant 0 : index
      %c0_18 = arith.constant 0 : index
      %21 = vector.load %arg7[%c0_17, %c0_18] : memref<1x128xf32, #tpu.memory_space<vmem>>, vector<1x128xf32>
      %22 = vector.broadcast %21 : vector<1x128xf32> to vector<512x128xf32>
      %23 = arith.mulf %22, %18 : vector<512x128xf32>
      %24 = arith.select %20, %18, %23 : vector<512x128xi1>, vector<512x128xf32>
      %c0_19 = arith.constant 0 : index
      %c0_20 = arith.constant 0 : index
      %25 = vector.load %arg8[%c0_19, %c0_20] : memref<512x128xf32, #tpu.memory_space<vmem>>, vector<512x128xf32>
      tpu.vector_store %arg8[%c0_19, %c0_20], %24 {strides = array<i32>} : memref<512x128xf32, #tpu.memory_space<vmem>>, vector<512x128xf32>,
    } else {
    }
    return
  }
  func.func @transform_0(%arg0: i32, %arg1: i32, %arg2: i32) -> (i32, i32) {
    %c0_i32 = arith.constant 0 : i32
    return %arg0, %arg2 : i32, i32
  }
  func.func @transform_1(%arg0: i32, %arg1: i32, %arg2: i32) -> (i32, i32) {
    %c0_i32 = arith.constant 0 : i32
    return %arg2, %arg1 : i32, i32
  }
  func.func @transform_2(%arg0: i32, %arg1: i32, %arg2: i32) -> (i32, i32) {
    %c0_i32 = arith.constant 0 : i32
    %c0_i32_0 = arith.constant 0 : i32
    return %c0_i32, %arg1 : i32, i32
  }
  func.func @transform_3(%arg0: i32, %arg1: i32, %arg2: i32) -> (i32, i32) {
    %c0_i32 = arith.constant 0 : i32
    %c0_i32_0 = arith.constant 0 : i32
    return %c0_i32, %arg1 : i32, i32
  }
  func.func @transform_4(%arg0: i32, %arg1: i32, %arg2: i32) -> (i32, i32) {
    %c0_i32 = arith.constant 0 : i32
    %c0_i32_0 = arith.constant 0 : i32
    return %c0_i32, %arg1 : i32, i32
  }
  func.func @transform_5(%arg0: i32, %arg1: i32, %arg2: i32) -> (i32, i32) {
    %c0_i32 = arith.constant 0 : i32
    return %arg0, %arg1 : i32, i32
  }
}

</mosaic_0001>

<llo_original>
// kernel: matmul_fused.1
$region0: #{matmul_fused.1}
  #allocation0 [shape = 'u32[]', space=smem, size = 0x4, offset = 0x4, fixed_abs, tag = 'smem constant byte address 0x4 - core index']
  #allocation1 [shape = 'u32[144,128]{1,0:T(1,128)}', space=vmem, size = 0x12000, scoped, tag = 'internal scratch']
  #allocation2 [shape = 'f32[512,128]{1,0:T(8,128)}', space=vmem, size = 0x40000, scoped, tag = 'scratch operand']
  %s0 = inlined_call_operand.vmem [shape: bf16[2048,128], index: 0, kind: input, shape index: {}]
  %s1 = inlined_call_operand.vmem [shape: bf16[128,128], index: 1, kind: input, shape index: {}]
  %s2 = inlined_call_operand.vmem [shape: f32[1,128], index: 2, kind: input, shape index: {}]
  %s3 = inlined_call_operand.vmem [shape: f32[1,128], index: 3, kind: input, shape index: {}]
  %s4 = inlined_call_operand.vmem [shape: f32[1,128], index: 4, kind: input, shape index: {}]
  %s5 = inlined_call_operand.vmem [shape: f32[2048,128], index: 5, kind: output, shape index: {}]
  %s6 = sld [smem:[#allocation0]]
  $region61: #{matmul_fused.1} parent=0
    _
  %s8 = ssub.s32 1, %s6
  %s9 = scalar_select 0, %s8, %s6
  loop: start=0, step=1, limit=6
  $region2: #{matmul_fused.1} parent=0 // loop_pre_header
    _
  $region3: #{matmul_fused.1} parent=0 // loop_header
    %s11 = sphi 0, %s15
    %p12 = scmp.ge.s32.totalorder %s11, 6
    %s18 = sphi 0, %s37
    %s19 = sphi 0, %s33
    %s20 = sphi 0, %s29
    %s21 = sphi 0, %s18
    %s22 = sphi 0, %s19
    %s23 = sphi 0, %s20
    %s24 = sphi 0, %s21
    %s25 = sphi 0, %s22
    %s26 = sphi 0, %s23
    %s42 = sphi 0, %s44
    %s45 = sphi 0, %s42
    %s46 = sphi 0, %s45
    %s62 = sphi 0, %s46
    %s70 = sphi 0, %s72
    %s73 = sphi 0, %s70
    %s74 = sphi 0, %s73
    %s90 = sphi 0, %s74
    %s96 = sphi 0, %s98
    %s99 = sphi 0, %s96
    %s100 = sphi 0, %s99
    %s116 = sphi 0, %s100
    %s122 = sphi 0, %s124
    %s125 = sphi 0, %s122
    %s126 = sphi 0, %s125
    %s142 = sphi 0, %s126
    %s148 = sphi 0, %s150
    %s151 = sphi 0, %s148
    %s152 = sphi 0, %s151
    %s168 = sphi 0, %s152
    %s176 = sphi 0, %s178
    %s179 = sphi 0, %s176
    %s180 = sphi 0, %s179
    %s196 = sphi 0, %s180
  $region4: #{matmul_fused.1} parent=0 // loop_header_branch
    %14 = sbr.rel (%p12) target = $region8
  $region5: #{matmul_fused.1} parent=0 // loop_body
    %s16 = ssub.s32 %s11, 1
    %s17 = ssub.s32 %s11, 2
    %s27 = sadd.s32 1, %s20
    %p28 = scmp.ge.s32.totalorder %s27, 1
    %s29 = scalar_select %p28, 0, %s27
    %s30 = sadd.s32 1, %s19
    %s31 = scalar_select %p28, %s30, %s19
    %p32 = scmp.ge.s32.totalorder %s31, 1
    %s33 = scalar_select %p32, 0, %s31
    %s34 = sadd.s32 1, %s18
    %s35 = scalar_select %p32, %s34, %s18
    %p36 = scmp.ge.s32.totalorder %s35, 4
    %s37 = scalar_select %p36, 0, %s35
    %s38 = ssub.s32 %s18, %s37
    %s39 = ssub.s32 %s20, %s29
    %s40 = sor.u32 %s38, %s39
    %p41 = scmp.eq.s32.totalorder %s40, 0
    %s43 = sadd.s32 %s42, 1
    %s44 = scalar_select %p41, %s42, %s43
    %p47 = pneg %p41
    %p48 = scmp.eq.s32.totalorder %s11, 3
    %p49 = por %p47, %p48
    %p50 = scmp.ne.s32.totalorder %s42, %s45
    %p51 = scmp.eq.s32.totalorder %s11, 0
    %p52 = por %p50, %p51
    %p53 = scmp.ne.s32.totalorder %s42, %s45
    %p54 = scmp.eq.s32.totalorder %s16, 3
    %p55 = por %p53, %p54
    %p56 = scmp.ne.s32.totalorder %s45, %s46
    %p57 = scmp.eq.s32.totalorder %s16, 0
    %p58 = por %p56, %p57
    %p59 = scmp.ne.s32.totalorder %s45, %s46
    %p60 = scmp.eq.s32.totalorder %s17, 3
    %p61 = por %p59, %p60
    %p63 = scmp.ne.s32.totalorder %s46, %s62
    %p64 = scmp.eq.s32.totalorder %s17, 0
    %p65 = por %p63, %p64
    %s66 = ssub.s32 %s20, %s29
    %s67 = ssub.s32 %s19, %s33
    %s68 = sor.u32 %s66, %s67
    %p69 = scmp.eq.s32.totalorder %s68, 0
    %s71 = sadd.s32 %s70, 1
    %s72 = scalar_select %p69, %s70, %s71
    %p75 = pneg %p69
    %p76 = scmp.eq.s32.totalorder %s11, 3
    %p77 = por %p75, %p76
    %p78 = scmp.ne.s32.totalorder %s70, %s73
    %p79 = scmp.eq.s32.totalorder %s11, 0
    %p80 = por %p78, %p79
    %p81 = scmp.ne.s32.totalorder %s70, %s73
    %p82 = scmp.eq.s32.totalorder %s16, 3
    %p83 = por %p81, %p82
    %p84 = scmp.ne.s32.totalorder %s73, %s74
    %p85 = scmp.eq.s32.totalorder %s16, 0
    %p86 = por %p84, %p85
    %p87 = scmp.ne.s32.totalorder %s73, %s74
    %p88 = scmp.eq.s32.totalorder %s17, 3
    %p89 = por %p87, %p88
    %p91 = scmp.ne.s32.totalorder %s74, %s90
    %p92 = scmp.eq.s32.totalorder %s17, 0
    %p93 = por %p91, %p92
    %s94 = ssub.s32 %s19, %s33
    %p95 = scmp.eq.s32.totalorder %s94, 0
    %s97 = sadd.s32 %s96, 1
    %s98 = scalar_select %p95, %s96, %s97
    %p101 = pneg %p95
    %p102 = scmp.eq.s32.totalorder %s11, 3
    %p103 = por %p101, %p102
    %p104 = scmp.ne.s32.totalorder %s96, %s99
    %p105 = scmp.eq.s32.totalorder %s11, 0
    %p106 = por %p104, %p105
    %p107 = scmp.ne.s32.totalorder %s96, %s99
    %p108 = scmp.eq.s32.totalorder %s16, 3
    %p109 = por %p107, %p108
    %p110 = scmp.ne.s32.totalorder %s99, %s100
    %p111 = scmp.eq.s32.totalorder %s16, 0
    %p112 = por %p110, %p111
    %p113 = scmp.ne.s32.totalorder %s99, %s100
    %p114 = scmp.eq.s32.totalorder %s17, 3
    %p115 = por %p113, %p114
    %p117 = scmp.ne.s32.totalorder %s100, %s116
    %p118 = scmp.eq.s32.totalorder %s17, 0
    %p119 = por %p117, %p118
    %s120 = ssub.s32 %s19, %s33
    %p121 = scmp.eq.s32.totalorder %s120, 0
    %s123 = sadd.s32 %s122, 1
    %s124 = scalar_select %p121, %s122, %s123
    %p127 = pneg %p121
    %p128 = scmp.eq.s32.totalorder %s11, 3
    %p129 = por %p127, %p128
    %p130 = scmp.ne.s32.totalorder %s122, %s125
    %p131 = scmp.eq.s32.totalorder %s11, 0
    %p132 = por %p130, %p131
    %p133 = scmp.ne.s32.totalorder %s122, %s125
    %p134 = scmp.eq.s32.totalorder %s16, 3
    %p135 = por %p133, %p134
    %p136 = scmp.ne.s32.totalorder %s125, %s126
    %p137 = scmp.eq.s32.totalorder %s16, 0
    %p138 = por %p136, %p137
    %p139 = scmp.ne.s32.totalorder %s125, %s126
    %p140 = scmp.eq.s32.totalorder %s17, 3
    %p141 = por %p139, %p140
    %p143 = scmp.ne.s32.totalorder %s126, %s142
    %p144 = scmp.eq.s32.totalorder %s17, 0
    %p145 = por %p143, %p144
    %s146 = ssub.s32 %s19, %s33
    %p147 = scmp.eq.s32.totalorder %s146, 0
    %s149 = sadd.s32 %s148, 1
    %s150 = scalar_select %p147, %s148, %s149
    %p153 = pneg %p147
    %p154 = scmp.eq.s32.totalorder %s11, 3
    %p155 = por %p153, %p154
    %p156 = scmp.ne.s32.totalorder %s148, %s151
    %p157 = scmp.eq.s32.totalorder %s11, 0
    %p158 = por %p156, %p157
    %p159 = scmp.ne.s32.totalorder %s148, %s151
    %p160 = scmp.eq.s32.totalorder %s16, 3
    %p161 = por %p159, %p160
    %p162 = scmp.ne.s32.totalorder %s151, %s152
    %p163 = scmp.eq.s32.totalorder %s16, 0
    %p164 = por %p162, %p163
    %p165 = scmp.ne.s32.totalorder %s151, %s152
    %p166 = scmp.eq.s32.totalorder %s17, 3
    %p167 = por %p165, %p166
    %p169 = scmp.ne.s32.totalorder %s152, %s168
    %p170 = scmp.eq.s32.totalorder %s17, 0
    %p171 = por %p169, %p170
    %s172 = ssub.s32 %s18, %s37
    %s173 = ssub.s32 %s19, %s33
    %s174 = sor.u32 %s172, %s173
    %p175 = scmp.eq.s32.totalorder %s174, 0
    %s177 = sadd.s32 %s176, 1
    %s178 = scalar_select %p175, %s176, %s177
    %p181 = pneg %p175
    %p182 = scmp.eq.s32.totalorder %s11, 3
    %p183 = por %p181, %p182
    %p184 = scmp.ne.s32.totalorder %s176, %s179
    %p185 = scmp.eq.s32.totalorder %s11, 0
    %p186 = por %p184, %p185
    %p187 = scmp.ne.s32.totalorder %s176, %s179
    %p188 = scmp.eq.s32.totalorder %s16, 3
    %p189 = por %p187, %p188
    %p190 = scmp.ne.s32.totalorder %s179, %s180
    %p191 = scmp.eq.s32.totalorder %s16, 0
    %p192 = por %p190, %p191
    %p193 = scmp.ne.s32.totalorder %s179, %s180
    %p194 = scmp.eq.s32.totalorder %s17, 3
    %p195 = por %p193, %p194
    %p197 = scmp.ne.s32.totalorder %s180, %s196
    %p198 = scmp.eq.s32.totalorder %s17, 0
    %p199 = por %p197, %p198
    %p200 = scmp.le.s32.totalorder 1, %s11
    %p201 = scmp.lt.s32.totalorder %s11, 5
    %p202 = pnand %p200, %p201
    %p203 = pneg %p202
    // Predicated region
    $region9: #{matmul_fused.1} parent=5 // pred_check
      _
    $region10: #{matmul_fused.1} parent=5 // pred_check_branch
      %205 = sbr.rel (%p202) target = $region12
    $region11: #{matmul_fused.1} parent=5 // pred_region
      %s206 = ssub.s32 %s11, 1
      // Predicated region
      $region13: #{matmul_fused.1} parent=11 // pred_check
        %p207 = pneg %p86
      $region14: #{matmul_fused.1} parent=11 // pred_check_branch
        %209 = sbr.rel (%p207) target = $region16
      $region15: #{matmul_fused.1} parent=11 // pred_region
        %s210 = smul.u32 16, %s23
        %p211 = scmp.lt.s32.totalorder %s210, 15
        %s212 = scalar_select %p211, %s210, 15
        %p213 = scmp.lt.s32.totalorder %s22, 0
        %s214 = scalar_select %p213, %s22, 0
        %s215 = sadd.s32 %s214, %s212
        %s216 = smul.addr %s215, 4
        %s217 = scalar_lea.vmem %s1, %s216
        %s218 = smul.u32 16, %s23
      $region16: #{matmul_fused.1} parent=11 // pred_fallthru
        _
      // Predicated region
      $region17: #{matmul_fused.1} parent=11 // pred_check
        %p219 = pneg %p112
      $region18: #{matmul_fused.1} parent=11 // pred_check_branch
        %221 = sbr.rel (%p219) target = $region20
      $region19: #{matmul_fused.1} parent=11 // pred_region
        %p222 = scmp.lt.s32.totalorder %s22, 0
        %s223 = scalar_select %p222, %s22, 0
        %s224 = scalar_lea.vmem %s2, %s223
      $region20: #{matmul_fused.1} parent=11 // pred_fallthru
        _
      // Predicated region
      $region21: #{matmul_fused.1} parent=11 // pred_check
        %p225 = pneg %p138
      $region22: #{matmul_fused.1} parent=11 // pred_check_branch
        %227 = sbr.rel (%p225) target = $region24
      $region23: #{matmul_fused.1} parent=11 // pred_region
        %p228 = scmp.lt.s32.totalorder %s22, 0
        %s229 = scalar_select %p228, %s22, 0
        %s230 = scalar_lea.vmem %s3, %s229
      $region24: #{matmul_fused.1} parent=11 // pred_fallthru
        _
      // Predicated region
      $region25: #{matmul_fused.1} parent=11 // pred_check
        %p231 = pneg %p164
      $region26: #{matmul_fused.1} parent=11 // pred_check_branch
        %233 = sbr.rel (%p231) target = $region28
      $region27: #{matmul_fused.1} parent=11 // pred_region
        %p234 = scmp.lt.s32.totalorder %s22, 0
        %s235 = scalar_select %p234, %s22, 0
        %s236 = scalar_lea.vmem %s4, %s235
      $region28: #{matmul_fused.1} parent=11 // pred_fallthru
        _
    $region12: #{matmul_fused.1} parent=5 // pred_fallthru
      _
    %p237 = scmp.lt.s32.totalorder %s11, 4
    // Predicated region
    $region29: #{matmul_fused.1} parent=5 // pred_check
      %p238 = pneg %p237
    $region30: #{matmul_fused.1} parent=5 // pred_check_branch
      %240 = sbr.rel (%p238) target = $region32
    $region31: #{matmul_fused.1} parent=5 // pred_region
      // Predicated region
      $region33: #{matmul_fused.1} parent=31 // pred_check
        %p241 = pneg %p52
      $region34: #{matmul_fused.1} parent=31 // pred_check_branch
        %243 = sbr.rel (%p241) target = $region36
      $region35: #{matmul_fused.1} parent=31 // pred_region
        %s244 = smul.u32 64, %s18
        %p245 = scmp.lt.s32.totalorder %s244, 255
        %s246 = scalar_select %p245, %s244, 255
        %p247 = scmp.lt.s32.totalorder %s20, 0
        %s248 = scalar_select %p247, %s20, 0
        %s249 = sadd.s32 %s248, %s246
        %s250 = smul.addr %s249, 4
        %s251 = scalar_lea.vmem %s0, %s250
        %s252 = smul.u32 64, %s18
      $region36: #{matmul_fused.1} parent=31 // pred_fallthru
        _
    $region32: #{matmul_fused.1} parent=5 // pred_fallthru
      _
    %p253 = scmp.le.s32.totalorder 1, %s11
    %p254 = scmp.lt.s32.totalorder %s11, 5
    %p255 = pnand %p253, %p254
    %p256 = pneg %p255
    // Predicated region
    $region37: #{matmul_fused.1} parent=5 // pred_check
      _
    $region38: #{matmul_fused.1} parent=5 // pred_check_branch
      %258 = sbr.rel (%p255) target = $region40
    $region39: #{matmul_fused.1} parent=5 // pred_region
      %s259 = ssub.s32 %s11, 1
      %s260 = smul.u32 64, %s21
      %p261 = scmp.lt.s32.totalorder %s260, 255
      %s262 = scalar_select %p261, %s260, 255
      %p263 = scmp.lt.s32.totalorder %s23, 0
      %s264 = scalar_select %p263, %s23, 0
      %s265 = sadd.s32 %s264, %s262
      %s266 = smul.addr %s265, 4
      %s267 = scalar_lea.vmem %s0, %s266
      %p268 = pneg %p58
      %p269 = pneg %p55
      %s270 = smul.u32 16, %s23
      %p271 = scmp.lt.s32.totalorder %s270, 15
      %s272 = scalar_select %p271, %s270, 15
      %p273 = scmp.lt.s32.totalorder %s22, 0
      %s274 = scalar_select %p273, %s22, 0
      %s275 = sadd.s32 %s274, %s272
      %s276 = smul.addr %s275, 4
      %s277 = scalar_lea.vmem %s1, %s276
      %p278 = pneg %p86
      %p279 = pneg %p83
      %p280 = scmp.lt.s32.totalorder %s22, 0
      %s281 = scalar_select %p280, %s22, 0
      %s282 = scalar_lea.vmem %s2, %s281
      %p283 = pneg %p112
      %p284 = pneg %p109
      %p285 = scmp.lt.s32.totalorder %s22, 0
      %s286 = scalar_select %p285, %s22, 0
      %s287 = scalar_lea.vmem %s3, %s286
      %p288 = pneg %p138
      %p289 = pneg %p135
      %p290 = scmp.lt.s32.totalorder %s22, 0
      %s291 = scalar_select %p290, %s22, 0
      %s292 = scalar_lea.vmem %s4, %s291
      %p293 = pneg %p164
      %p294 = pneg %p161
      %p295 = pneg %p192
      %p296 = pneg %p189
      %s297 = smul.u32 64, %s21
      %p298 = scmp.lt.s32.totalorder %s297, 255
      %s299 = scalar_select %p298, %s297, 255
      %p300 = scmp.lt.s32.totalorder %s22, 0
      %s301 = scalar_select %p300, %s22, 0
      %s302 = sadd.s32 %s301, %s299
      %s303 = smul.addr %s302, 8
      %s304 = scalar_lea.vmem %s5, %s303
      %s305 = smul.u32 64, %s21
      %p306 = scmp.lt.s32.totalorder %s305, 255
      %s307 = scalar_select %p306, %s305, 255
      %p308 = scmp.lt.s32.totalorder %s23, 0
      %s309 = scalar_select %p308, %s23, 0
      %s310 = sadd.s32 %s309, %s307
      %s311 = smul.addr %s310, 4
      %s312 = scalar_lea.vmem %s0, %s311
      %s313 = smul.u32 64, %s21
      %s314 = smul.u32 16, %s23
      %p315 = scmp.lt.s32.totalorder %s314, 15
      %s316 = scalar_select %p315, %s314, 15
      %p317 = scmp.lt.s32.totalorder %s22, 0
      %s318 = scalar_select %p317, %s22, 0
      %s319 = sadd.s32 %s318, %s316
      %s320 = smul.addr %s319, 4
      %s321 = scalar_lea.vmem %s1, %s320
      %s322 = smul.u32 16, %s23
      %p323 = scmp.lt.s32.totalorder %s22, 0
      %s324 = scalar_select %p323, %s22, 0
      %s325 = scalar_lea.vmem %s2, %s324
      %p326 = scmp.lt.s32.totalorder %s22, 0
      %s327 = scalar_select %p326, %s22, 0
      %s328 = scalar_lea.vmem %s3, %s327
      %p329 = scmp.lt.s32.totalorder %s22, 0
      %s330 = scalar_select %p329, %s22, 0
      %s331 = scalar_lea.vmem %s4, %s330
      %s332 = smul.u32 64, %s21
      %p333 = scmp.lt.s32.totalorder %s332, 255
      %s334 = scalar_select %p333, %s332, 255
      %p335 = scmp.lt.s32.totalorder %s22, 0
      %s336 = scalar_select %p335, %s22, 0
      %s337 = sadd.s32 %s336, %s334
      %s338 = smul.addr %s337, 8
      %s339 = scalar_lea.vmem %s5, %s338
      %s340 = smul.u32 64, %s21
      %p342 = scmp.eq.s32.totalorder %s23, 0
      // Predicated region
      $region41: #{matmul_fused.1} parent=39 // pred_check
        %p343 = pneg %p342
      $region42: #{matmul_fused.1} parent=39 // pred_check_branch
        %345 = sbr.rel (%p343) target = $region44
      $region43: #{matmul_fused.1} parent=39 // pred_region
        %346 = vst [vmem:[#allocation2] sm:$0xff] 0.0
        %347 = vst [vmem:[#allocation2 + $0x8] sm:$0xff] 0.0
        %348 = vst [vmem:[#allocation2 + $0x10] sm:$0xff] 0.0
        %349 = vst [vmem:[#allocation2 + $0x18] sm:$0xff] 0.0
        %350 = vst [vmem:[#allocation2 + $0x20] sm:$0xff] 0.0
        %351 = vst [vmem:[#allocation2 + $0x28] sm:$0xff] 0.0
        %352 = vst [vmem:[#allocation2 + $0x30] sm:$0xff] 0.0
        %353 = vst [vmem:[#allocation2 + $0x38] sm:$0xff] 0.0
        %354 = vst [vmem:[#allocation2 + $0x40] sm:$0xff] 0.0
        %355 = vst [vmem:[#allocation2 + $0x48] sm:$0xff] 0.0
        %356 = vst [vmem:[#allocation2 + $0x50] sm:$0xff] 0.0
        %357 = vst [vmem:[#allocation2 + $0x58] sm:$0xff] 0.0
        %358 = vst [vmem:[#allocation2 + $0x60] sm:$0xff] 0.0
        %359 = vst [vmem:[#allocation2 + $0x68] sm:$0xff] 0.0
        %360 = vst [vmem:[#allocation2 + $0x70] sm:$0xff] 0.0
        %361 = vst [vmem:[#allocation2 + $0x78] sm:$0xff] 0.0
        %362 = vst [vmem:[#allocation2 + $0x80] sm:$0xff] 0.0
        %363 = vst [vmem:[#allocation2 + $0x88] sm:$0xff] 0.0
        %364 = vst [vmem:[#allocation2 + $0x90] sm:$0xff] 0.0
        %365 = vst [vmem:[#allocation2 + $0x98] sm:$0xff] 0.0
        %366 = vst [vmem:[#allocation2 + $0xa0] sm:$0xff] 0.0
        %367 = vst [vmem:[#allocation2 + $0xa8] sm:$0xff] 0.0
        %368 = vst [vmem:[#allocation2 + $0xb0] sm:$0xff] 0.0
        %369 = vst [vmem:[#allocation2 + $0xb8] sm:$0xff] 0.0
        %370 = vst [vmem:[#allocation2 + $0xc0] sm:$0xff] 0.0
        %371 = vst [vmem:[#allocation2 + $0xc8] sm:$0xff] 0.0
        %372 = vst [vmem:[#allocation2 + $0xd0] sm:$0xff] 0.0
        %373 = vst [vmem:[#allocation2 + $0xd8] sm:$0xff] 0.0
        %374 = vst [vmem:[#allocation2 + $0xe0] sm:$0xff] 0.0
        %375 = vst [vmem:[#allocation2 + $0xe8] sm:$0xff] 0.0
        %376 = vst [vmem:[#allocation2 + $0xf0] sm:$0xff] 0.0
        %377 = vst [vmem:[#allocation2 + $0xf8] sm:$0xff] 0.0
        %378 = vst [vmem:[#allocation2 + $0x100] sm:$0xff] 0.0
        %379 = vst [vmem:[#allocation2 + $0x108] sm:$0xff] 0.0
        %380 = vst [vmem:[#allocation2 + $0x110] sm:$0xff] 0.0
        %381 = vst [vmem:[#allocation2 + $0x118] sm:$0xff] 0.0
        %382 = vst [vmem:[#allocation2 + $0x120] sm:$0xff] 0.0
        %383 = vst [vmem:[#allocation2 + $0x128] sm:$0xff] 0.0
        %384 = vst [vmem:[#allocation2 + $0x130] sm:$0xff] 0.0
        %385 = vst [vmem:[#allocation2 + $0x138] sm:$0xff] 0.0
        %386 = vst [vmem:[#allocation2 + $0x140] sm:$0xff] 0.0
        %387 = vst [vmem:[#allocation2 + $0x148] sm:$0xff] 0.0
        %388 = vst [vmem:[#allocation2 + $0x150] sm:$0xff] 0.0
        %389 = vst [vmem:[#allocation2 + $0x158] sm:$0xff] 0.0
        %390 = vst [vmem:[#allocation2 + $0x160] sm:$0xff] 0.0
        %391 = vst [vmem:[#allocation2 + $0x168] sm:$0xff] 0.0
        %392 = vst [vmem:[#allocation2 + $0x170] sm:$0xff] 0.0
        %393 = vst [vmem:[#allocation2 + $0x178] sm:$0xff] 0.0
        %394 = vst [vmem:[#allocation2 + $0x180] sm:$0xff] 0.0
        %395 = vst [vmem:[#allocation2 + $0x188] sm:$0xff] 0.0
        %396 = vst [vmem:[#allocation2 + $0x190] sm:$0xff] 0.0
        %397 = vst [vmem:[#allocation2 + $0x198] sm:$0xff] 0.0
        %398 = vst [vmem:[#allocation2 + $0x1a0] sm:$0xff] 0.0
        %399 = vst [vmem:[#allocation2 + $0x1a8] sm:$0xff] 0.0
        %400 = vst [vmem:[#allocation2 + $0x1b0] sm:$0xff] 0.0
        %401 = vst [vmem:[#allocation2 + $0x1b8] sm:$0xff] 0.0
        %402 = vst [vmem:[#allocation2 + $0x1c0] sm:$0xff] 0.0
        %403 = vst [vmem:[#allocation2 + $0x1c8] sm:$0xff] 0.0
        %404 = vst [vmem:[#allocation2 + $0x1d0] sm:$0xff] 0.0
        %405 = vst [vmem:[#allocation2 + $0x1d8] sm:$0xff] 0.0
        %406 = vst [vmem:[#allocation2 + $0x1e0] sm:$0xff] 0.0
        %407 = vst [vmem:[#allocation2 + $0x1e8] sm:$0xff] 0.0
        %408 = vst [vmem:[#allocation2 + $0x1f0] sm:$0xff] 0.0
        %409 = vst [vmem:[#allocation2 + $0x1f8] sm:$0xff] 0.0
      $region44: #{matmul_fused.1} parent=39 // pred_fallthru
        _
      %v410 = vld [vmem:[#allocation2] sm:$0xff]
      %v411 = vld [vmem:[#allocation2 + $0x8] sm:$0xff]
      %v412 = vld [vmem:[#allocation2 + $0x10] sm:$0xff]
      %v413 = vld [vmem:[#allocation2 + $0x18] sm:$0xff]
      %v414 = vld [vmem:[#allocation2 + $0x20] sm:$0xff]
      %v415 = vld [vmem:[#allocation2 + $0x28] sm:$0xff]
      %v416 = vld [vmem:[#allocation2 + $0x30] sm:$0xff]
      %v417 = vld [vmem:[#allocation2 + $0x38] sm:$0xff]
      %v418 = vld [vmem:[#allocation2 + $0x40] sm:$0xff]
      %v419 = vld [vmem:[#allocation2 + $0x48] sm:$0xff]
      %v420 = vld [vmem:[#allocation2 + $0x50] sm:$0xff]
      %v421 = vld [vmem:[#allocation2 + $0x58] sm:$0xff]
      %v422 = vld [vmem:[#allocation2 + $0x60] sm:$0xff]
      %v423 = vld [vmem:[#allocation2 + $0x68] sm:$0xff]
      %v424 = vld [vmem:[#allocation2 + $0x70] sm:$0xff]
      %v425 = vld [vmem:[#allocation2 + $0x78] sm:$0xff]
      %v426 = vld [vmem:[#allocation2 + $0x80] sm:$0xff]
      %v427 = vld [vmem:[#allocation2 + $0x88] sm:$0xff]
      %v428 = vld [vmem:[#allocation2 + $0x90] sm:$0xff]
      %v429 = vld [vmem:[#allocation2 + $0x98] sm:$0xff]
      %v430 = vld [vmem:[#allocation2 + $0xa0] sm:$0xff]
      %v431 = vld [vmem:[#allocation2 + $0xa8] sm:$0xff]
      %v432 = vld [vmem:[#allocation2 + $0xb0] sm:$0xff]
      %v433 = vld [vmem:[#allocation2 + $0xb8] sm:$0xff]
      %v434 = vld [vmem:[#allocation2 + $0xc0] sm:$0xff]
      %v435 = vld [vmem:[#allocation2 + $0xc8] sm:$0xff]
      %v436 = vld [vmem:[#allocation2 + $0xd0] sm:$0xff]
      %v437 = vld [vmem:[#allocation2 + $0xd8] sm:$0xff]
      %v438 = vld [vmem:[#allocation2 + $0xe0] sm:$0xff]
      %v439 = vld [vmem:[#allocation2 + $0xe8] sm:$0xff]
      %v440 = vld [vmem:[#allocation2 + $0xf0] sm:$0xff]
      %v441 = vld [vmem:[#allocation2 + $0xf8] sm:$0xff]
      %v442 = vld [vmem:[#allocation2 + $0x100] sm:$0xff]
      %v443 = vld [vmem:[#allocation2 + $0x108] sm:$0xff]
      %v444 = vld [vmem:[#allocation2 + $0x110] sm:$0xff]
      %v445 = vld [vmem:[#allocation2 + $0x118] sm:$0xff]
      %v446 = vld [vmem:[#allocation2 + $0x120] sm:$0xff]
      %v447 = vld [vmem:[#allocation2 + $0x128] sm:$0xff]
      %v448 = vld [vmem:[#allocation2 + $0x130] sm:$0xff]
      %v449 = vld [vmem:[#allocation2 + $0x138] sm:$0xff]
      %v450 = vld [vmem:[#allocation2 + $0x140] sm:$0xff]
      %v451 = vld [vmem:[#allocation2 + $0x148] sm:$0xff]
      %v452 = vld [vmem:[#allocation2 + $0x150] sm:$0xff]
      %v453 = vld [vmem:[#allocation2 + $0x158] sm:$0xff]
      %v454 = vld [vmem:[#allocation2 + $0x160] sm:$0xff]
      %v455 = vld [vmem:[#allocation2 + $0x168] sm:$0xff]
      %v456 = vld [vmem:[#allocation2 + $0x170] sm:$0xff]
      %v457 = vld [vmem:[#allocation2 + $0x178] sm:$0xff]
      %v458 = vld [vmem:[#allocation2 + $0x180] sm:$0xff]
      %v459 = vld [vmem:[#allocation2 + $0x188] sm:$0xff]
      %v460 = vld [vmem:[#allocation2 + $0x190] sm:$0xff]
      %v461 = vld [vmem:[#allocation2 + $0x198] sm:$0xff]
      %v462 = vld [vmem:[#allocation2 + $0x1a0] sm:$0xff]
      %v463 = vld [vmem:[#allocation2 + $0x1a8] sm:$0xff]
      %v464 = vld [vmem:[#allocation2 + $0x1b0] sm:$0xff]
      %v465 = vld [vmem:[#allocation2 + $0x1b8] sm:$0xff]
      %v466 = vld [vmem:[#allocation2 + $0x1c0] sm:$0xff]
      %v467 = vld [vmem:[#allocation2 + $0x1c8] sm:$0xff]
      %v468 = vld [vmem:[#allocation2 + $0x1d0] sm:$0xff]
      %v469 = vld [vmem:[#allocation2 + $0x1d8] sm:$0xff]
      %v470 = vld [vmem:[#allocation2 + $0x1e0] sm:$0xff]
      %v471 = vld [vmem:[#allocation2 + $0x1e8] sm:$0xff]
      %v472 = vld [vmem:[#allocation2 + $0x1f0] sm:$0xff]
      %v473 = vld [vmem:[#allocation2 + $0x1f8] sm:$0xff]
      %v474 = vld [vmem:[%s312] sm:$0xf]
      %v475 = vld [vmem:[%s312 + $0x4] sm:$0xf]
      %v476 = vld [vmem:[%s312 + $0x8] sm:$0xf]
      %v477 = vld [vmem:[%s312 + $0xc] sm:$0xf]
      %v478 = vld [vmem:[%s312 + $0x10] sm:$0xf]
      %v479 = vld [vmem:[%s312 + $0x14] sm:$0xf]
      %v480 = vld [vmem:[%s312 + $0x18] sm:$0xf]
      %v481 = vld [vmem:[%s312 + $0x1c] sm:$0xf]
      %v482 = vld [vmem:[%s312 + $0x20] sm:$0xf]
      %v483 = vld [vmem:[%s312 + $0x24] sm:$0xf]
      %v484 = vld [vmem:[%s312 + $0x28] sm:$0xf]
      %v485 = vld [vmem:[%s312 + $0x2c] sm:$0xf]
      %v486 = vld [vmem:[%s312 + $0x30] sm:$0xf]
      %v487 = vld [vmem:[%s312 + $0x34] sm:$0xf]
      %v488 = vld [vmem:[%s312 + $0x38] sm:$0xf]
      %v489 = vld [vmem:[%s312 + $0x3c] sm:$0xf]
      %v490 = vld [vmem:[%s312 + $0x40] sm:$0xf]
      %v491 = vld [vmem:[%s312 + $0x44] sm:$0xf]
      %v492 = vld [vmem:[%s312 + $0x48] sm:$0xf]
      %v493 = vld [vmem:[%s312 + $0x4c] sm:$0xf]
      %v494 = vld [vmem:[%s312 + $0x50] sm:$0xf]
      %v495 = vld [vmem:[%s312 + $0x54] sm:$0xf]
      %v496 = vld [vmem:[%s312 + $0x58] sm:$0xf]
      %v497 = vld [vmem:[%s312 + $0x5c] sm:$0xf]
      %v498 = vld [vmem:[%s312 + $0x60] sm:$0xf]
      %v499 = vld [vmem:[%s312 + $0x64] sm:$0xf]
      %v500 = vld [vmem:[%s312 + $0x68] sm:$0xf]
      %v501 = vld [vmem:[%s312 + $0x6c] sm:$0xf]
      %v502 = vld [vmem:[%s312 + $0x70] sm:$0xf]
      %v503 = vld [vmem:[%s312 + $0x74] sm:$0xf]
      %v504 = vld [vmem:[%s312 + $0x78] sm:$0xf]
      %v505 = vld [vmem:[%s312 + $0x7c] sm:$0xf]
      %v506 = vld [vmem:[%s312 + $0x80] sm:$0xf]
      %v507 = vld [vmem:[%s312 + $0x84] sm:$0xf]
      %v508 = vld [vmem:[%s312 + $0x88] sm:$0xf]
      %v509 = vld [vmem:[%s312 + $0x8c] sm:$0xf]
      %v510 = vld [vmem:[%s312 + $0x90] sm:$0xf]
      %v511 = vld [vmem:[%s312 + $0x94] sm:$0xf]
      %v512 = vld [vmem:[%s312 + $0x98] sm:$0xf]
      %v513 = vld [vmem:[%s312 + $0x9c] sm:$0xf]
      %v514 = vld [vmem:[%s312 + $0xa0] sm:$0xf]
      %v515 = vld [vmem:[%s312 + $0xa4] sm:$0xf]
      %v516 = vld [vmem:[%s312 + $0xa8] sm:$0xf]
      %v517 = vld [vmem:[%s312 + $0xac] sm:$0xf]
      %v518 = vld [vmem:[%s312 + $0xb0] sm:$0xf]
      %v519 = vld [vmem:[%s312 + $0xb4] sm:$0xf]
      %v520 = vld [vmem:[%s312 + $0xb8] sm:$0xf]
      %v521 = vld [vmem:[%s312 + $0xbc] sm:$0xf]
      %v522 = vld [vmem:[%s312 + $0xc0] sm:$0xf]
      %v523 = vld [vmem:[%s312 + $0xc4] sm:$0xf]
      %v524 = vld [vmem:[%s312 + $0xc8] sm:$0xf]
      %v525 = vld [vmem:[%s312 + $0xcc] sm:$0xf]
      %v526 = vld [vmem:[%s312 + $0xd0] sm:$0xf]
      %v527 = vld [vmem:[%s312 + $0xd4] sm:$0xf]
      %v528 = vld [vmem:[%s312 + $0xd8] sm:$0xf]
      %v529 = vld [vmem:[%s312 + $0xdc] sm:$0xf]
      %v530 = vld [vmem:[%s312 + $0xe0] sm:$0xf]
      %v531 = vld [vmem:[%s312 + $0xe4] sm:$0xf]
      %v532 = vld [vmem:[%s312 + $0xe8] sm:$0xf]
      %v533 = vld [vmem:[%s312 + $0xec] sm:$0xf]
      %v534 = vld [vmem:[%s312 + $0xf0] sm:$0xf]
      %v535 = vld [vmem:[%s312 + $0xf4] sm:$0xf]
      %v536 = vld [vmem:[%s312 + $0xf8] sm:$0xf]
      %v537 = vld [vmem:[%s312 + $0xfc] sm:$0xf]
      %v538 = vld [vmem:[%s321] sm:$0xf]
      %v539 = vld [vmem:[%s321 + $0x4] sm:$0xf]
      %v540 = vld [vmem:[%s321 + $0x8] sm:$0xf]
      %v541 = vld [vmem:[%s321 + $0xc] sm:$0xf]
      %v542 = vld [vmem:[%s321 + $0x10] sm:$0xf]
      %v543 = vld [vmem:[%s321 + $0x14] sm:$0xf]
      %v544 = vld [vmem:[%s321 + $0x18] sm:$0xf]
      %v545 = vld [vmem:[%s321 + $0x1c] sm:$0xf]
      %v546 = vld [vmem:[%s321 + $0x20] sm:$0xf]
      %v547 = vld [vmem:[%s321 + $0x24] sm:$0xf]
      %v548 = vld [vmem:[%s321 + $0x28] sm:$0xf]
      %v549 = vld [vmem:[%s321 + $0x2c] sm:$0xf]
      %v550 = vld [vmem:[%s321 + $0x30] sm:$0xf]
      %v551 = vld [vmem:[%s321 + $0x34] sm:$0xf]
      %v552 = vld [vmem:[%s321 + $0x38] sm:$0xf]
      %v553 = vld [vmem:[%s321 + $0x3c] sm:$0xf]
      %v618 = vunpack.c.l.b16 %v474
      %v619 = vunpack.c.l.b16 %v475
      %v620 = vunpack.c.l.b16 %v476
      %v621 = vunpack.c.l.b16 %v477
      %v622 = vunpack.c.l.b16 %v478
      %v623 = vunpack.c.l.b16 %v479
      %v624 = vunpack.c.l.b16 %v480
      %v625 = vunpack.c.l.b16 %v481
      %v626 = vunpack.c.l.b16 %v482
      %v627 = vunpack.c.l.b16 %v483
      %v628 = vunpack.c.l.b16 %v484
      %v629 = vunpack.c.l.b16 %v485
      %v630 = vunpack.c.l.b16 %v486
      %v631 = vunpack.c.l.b16 %v487
      %v632 = vunpack.c.l.b16 %v488
      %v633 = vunpack.c.l.b16 %v489
      %v634 = vunpack.c.l.b16 %v490
      %v635 = vunpack.c.l.b16 %v491
      %v636 = vunpack.c.l.b16 %v492
      %v637 = vunpack.c.l.b16 %v493
      %v638 = vunpack.c.l.b16 %v494
      %v639 = vunpack.c.l.b16 %v495
      %v640 = vunpack.c.l.b16 %v496
      %v641 = vunpack.c.l.b16 %v497
      %v642 = vunpack.c.l.b16 %v498
      %v643 = vunpack.c.l.b16 %v499
      %v644 = vunpack.c.l.b16 %v500
      %v645 = vunpack.c.l.b16 %v501
      %v646 = vunpack.c.l.b16 %v502
      %v647 = vunpack.c.l.b16 %v503
      %v648 = vunpack.c.l.b16 %v504
      %v649 = vunpack.c.l.b16 %v505
      %v650 = vunpack.c.l.b16 %v506
      %v651 = vunpack.c.l.b16 %v507
      %v652 = vunpack.c.l.b16 %v508
      %v653 = vunpack.c.l.b16 %v509
      %v654 = vunpack.c.l.b16 %v510
      %v655 = vunpack.c.l.b16 %v511
      %v656 = vunpack.c.l.b16 %v512
      %v657 = vunpack.c.l.b16 %v513
      %v658 = vunpack.c.l.b16 %v514
      %v659 = vunpack.c.l.b16 %v515
      %v660 = vunpack.c.l.b16 %v516
      %v661 = vunpack.c.l.b16 %v517
      %v662 = vunpack.c.l.b16 %v518
      %v663 = vunpack.c.l.b16 %v519
      %v664 = vunpack.c.l.b16 %v520
      %v665 = vunpack.c.l.b16 %v521
      %v666 = vunpack.c.l.b16 %v522
      %v667 = vunpack.c.l.b16 %v523
      %v668 = vunpack.c.l.b16 %v524
      %v669 = vunpack.c.l.b16 %v525
      %v670 = vunpack.c.l.b16 %v526
      %v671 = vunpack.c.l.b16 %v527
      %v672 = vunpack.c.l.b16 %v528
      %v673 = vunpack.c.l.b16 %v529
      %v674 = vunpack.c.l.b16 %v530
      %v675 = vunpack.c.l.b16 %v531
      %v676 = vunpack.c.l.b16 %v532
      %v677 = vunpack.c.l.b16 %v533
      %v678 = vunpack.c.l.b16 %v534
      %v679 = vunpack.c.l.b16 %v535
      %v680 = vunpack.c.l.b16 %v536
      %v681 = vunpack.c.l.b16 %v537
      %v682 = vpack.c.b16 %v619, %v618
      %v683 = vpack.c.b16 %v621, %v620
      %v684 = vpack.c.b16 %v623, %v622
      %v685 = vpack.c.b16 %v625, %v624
      %v686 = vpack.c.b16 %v627, %v626
      %v687 = vpack.c.b16 %v629, %v628
      %v688 = vpack.c.b16 %v631, %v630
      %v689 = vpack.c.b16 %v633, %v632
      %v690 = vpack.c.b16 %v635, %v634
      %v691 = vpack.c.b16 %v637, %v636
      %v692 = vpack.c.b16 %v639, %v638
      %v693 = vpack.c.b16 %v641, %v640
      %v694 = vpack.c.b16 %v643, %v642
      %v695 = vpack.c.b16 %v645, %v644
      %v696 = vpack.c.b16 %v647, %v646
      %v697 = vpack.c.b16 %v649, %v648
      %v698 = vpack.c.b16 %v651, %v650
      %v699 = vpack.c.b16 %v653, %v652
      %v700 = vpack.c.b16 %v655, %v654
      %v701 = vpack.c.b16 %v657, %v656
      %v702 = vpack.c.b16 %v659, %v658
      %v703 = vpack.c.b16 %v661, %v660
      %v704 = vpack.c.b16 %v663, %v662
      %v705 = vpack.c.b16 %v665, %v664
      %v706 = vpack.c.b16 %v667, %v666
      %v707 = vpack.c.b16 %v669, %v668
      %v708 = vpack.c.b16 %v671, %v670
      %v709 = vpack.c.b16 %v673, %v672
      %v710 = vpack.c.b16 %v675, %v674
      %v711 = vpack.c.b16 %v677, %v676
      %v712 = vpack.c.b16 %v679, %v678
      %v713 = vpack.c.b16 %v681, %v680
      %v762 = vunpack.c.l.b16 %v538
      %v763 = vunpack.c.l.b16 %v539
      %v764 = vunpack.c.l.b16 %v540
      %v765 = vunpack.c.l.b16 %v541
      %v766 = vunpack.c.l.b16 %v542
      %v767 = vunpack.c.l.b16 %v543
      %v768 = vunpack.c.l.b16 %v544
      %v769 = vunpack.c.l.b16 %v545
      %v770 = vunpack.c.l.b16 %v546
      %v771 = vunpack.c.l.b16 %v547
      %v772 = vunpack.c.l.b16 %v548
      %v773 = vunpack.c.l.b16 %v549
      %v774 = vunpack.c.l.b16 %v550
      %v775 = vunpack.c.l.b16 %v551
      %v776 = vunpack.c.l.b16 %v552
      %v777 = vunpack.c.l.b16 %v553
      %v778 = vpack.c.b16 %v763, %v762
      %v779 = vpack.c.b16 %v765, %v764
      %v780 = vpack.c.b16 %v767, %v766
      %v781 = vpack.c.b16 %v769, %v768
      %v782 = vpack.c.b16 %v771, %v770
      %v783 = vpack.c.b16 %v773, %v772
      %v784 = vpack.c.b16 %v775, %v774
      %v785 = vpack.c.b16 %v777, %v776
      %794 = vmatprep.subr.bf16.mxu0 0
      %795 = vmatpush1.bf16.msra.mxu0 %v785
      %796 = vmatprep.subr.bf16.mxu0 0
      %797 = vmatpush1.bf16.msra.mxu0 %v784
      %798 = vmatprep.subr.bf16.mxu0 0
      %799 = vmatpush1.bf16.msra.mxu0 %v783
      %800 = vmatprep.subr.bf16.mxu0 0
      %801 = vmatpush1.bf16.msra.mxu0 %v782
      %802 = vmatprep.subr.bf16.mxu0 0
      %803 = vmatpush1.bf16.msra.mxu0 %v781
      %804 = vmatprep.subr.bf16.mxu0 0
      %805 = vmatpush1.bf16.msra.mxu0 %v780
      %806 = vmatprep.subr.bf16.mxu0 0
      %807 = vmatpush1.bf16.msra.mxu0 %v779
      %808 = vmatprep.subr.bf16.mxu0 0
      %809 = vmatpush1.bf16.msra.mxu0 %v778
      %810 = vmatprep.subr.bf16.mxu0 0
      %811 = vmatpush2.bf16.msra.mxu0 0
      %812 = vmatprep.subr.bf16.mxu0 0
      %813 = vmatpush2.bf16.msra.mxu0 0
      %814 = vmatprep.subr.bf16.mxu0 0
      %815 = vmatpush2.bf16.msra.mxu0 0
      %816 = vmatprep.subr.bf16.mxu0 0
      %817 = vmatpush2.bf16.msra.mxu0 0
      %818 = vmatprep.subr.bf16.mxu0 0
      %819 = vmatpush2.bf16.msra.mxu0 0
      %820 = vmatprep.subr.bf16.mxu0 0
      %821 = vmatpush2.bf16.msra.mxu0 0
      %822 = vmatprep.subr.bf16.mxu0 0
      %823 = vmatpush2.bf16.msra.mxu0 0
      %824 = vmatprep.subr.bf16.mxu0 0
      %825 = vmatpush2.bf16.msra.mxu0 0
      %826 = vmatprep.mubr.bf16.mxu0 0
      %827 = vmatmul.mubr.bf16.gmra.mxu0 %v682
      %v828 = vpop.f32.mrf.mxu0
      %v829 = vadd.f32 0.0, %v828
      %v830 = vpop.f32.mrf.mxu0
      %v831 = vpop.f32.mrf.mxu0
      %v832 = vadd.f32 0.0, %v831
      %v833 = vpop.f32.mrf.mxu0
      %834 = vmatprep.mubr.bf16.mxu0 0
      %835 = vmatmul.mubr.bf16.gmra.mxu0 %v683
      %v836 = vpop.f32.mrf.mxu0
      %v837 = vadd.f32 0.0, %v836
      %v838 = vpop.f32.mrf.mxu0
      %v839 = vpop.f32.mrf.mxu0
      %v840 = vadd.f32 0.0, %v839
      %v841 = vpop.f32.mrf.mxu0
      %842 = vmatprep.mubr.bf16.mxu0 0
      %843 = vmatmul.mubr.bf16.gmra.mxu0 %v684
      %v844 = vpop.f32.mrf.mxu0
      %v845 = vadd.f32 0.0, %v844
      %v846 = vpop.f32.mrf.mxu0
      %v847 = vpop.f32.mrf.mxu0
      %v848 = vadd.f32 0.0, %v847
      %v849 = vpop.f32.mrf.mxu0
      %850 = vmatprep.mubr.bf16.mxu0 0
      %851 = vmatmul.mubr.bf16.gmra.mxu0 %v685
      %v852 = vpop.f32.mrf.mxu0
      %v853 = vadd.f32 0.0, %v852
      %v854 = vpop.f32.mrf.mxu0
      %v855 = vpop.f32.mrf.mxu0
      %v856 = vadd.f32 0.0, %v855
      %v857 = vpop.f32.mrf.mxu0
      %858 = vmatprep.mubr.bf16.mxu0 0
      %859 = vmatmul.mubr.bf16.gmra.mxu0 %v686
      %v860 = vpop.f32.mrf.mxu0
      %v861 = vadd.f32 0.0, %v860
      %v862 = vpop.f32.mrf.mxu0
      %v863 = vpop.f32.mrf.mxu0
      %v864 = vadd.f32 0.0, %v863
      %v865 = vpop.f32.mrf.mxu0
      %866 = vmatprep.mubr.bf16.mxu0 0
      %867 = vmatmul.mubr.bf16.gmra.mxu0 %v687
      %v868 = vpop.f32.mrf.mxu0
      %v869 = vadd.f32 0.0, %v868
      %v870 = vpop.f32.mrf.mxu0
      %v871 = vpop.f32.mrf.mxu0
      %v872 = vadd.f32 0.0, %v871
      %v873 = vpop.f32.mrf.mxu0
      %874 = vmatprep.mubr.bf16.mxu0 0
      %875 = vmatmul.mubr.bf16.gmra.mxu0 %v688
      %v876 = vpop.f32.mrf.mxu0
      %v877 = vadd.f32 0.0, %v876
      %v878 = vpop.f32.mrf.mxu0
      %v879 = vpop.f32.mrf.mxu0
      %v880 = vadd.f32 0.0, %v879
      %v881 = vpop.f32.mrf.mxu0
      %882 = vmatprep.mubr.bf16.mxu0 0
      %883 = vmatmul.mubr.bf16.gmra.mxu0 %v689
      %v884 = vpop.f32.mrf.mxu0
      %v885 = vadd.f32 0.0, %v884
      %v886 = vpop.f32.mrf.mxu0
      %v887 = vpop.f32.mrf.mxu0
      %v888 = vadd.f32 0.0, %v887
      %v889 = vpop.f32.mrf.mxu0
      %890 = vmatprep.mubr.bf16.mxu0 0
      %891 = vmatmul.mubr.bf16.gmra.mxu0 %v690
      %v892 = vpop.f32.mrf.mxu0
      %v893 = vadd.f32 0.0, %v892
      %v894 = vpop.f32.mrf.mxu0
      %v895 = vpop.f32.mrf.mxu0
      %v896 = vadd.f32 0.0, %v895
      %v897 = vpop.f32.mrf.mxu0
      %898 = vmatprep.mubr.bf16.mxu0 0
      %899 = vmatmul.mubr.bf16.gmra.mxu0 %v691
      %v900 = vpop.f32.mrf.mxu0
      %v901 = vadd.f32 0.0, %v900
      %v902 = vpop.f32.mrf.mxu0
      %v903 = vpop.f32.mrf.mxu0
      %v904 = vadd.f32 0.0, %v903
      %v905 = vpop.f32.mrf.mxu0
      %906 = vmatprep.mubr.bf16.mxu0 0
      %907 = vmatmul.mubr.bf16.gmra.mxu0 %v692
      %v908 = vpop.f32.mrf.mxu0
      %v909 = vadd.f32 0.0, %v908
      %v910 = vpop.f32.mrf.mxu0
      %v911 = vpop.f32.mrf.mxu0
      %v912 = vadd.f32 0.0, %v911
      %v913 = vpop.f32.mrf.mxu0
      %914 = vmatprep.mubr.bf16.mxu0 0
      %915 = vmatmul.mubr.bf16.gmra.mxu0 %v693
      %v916 = vpop.f32.mrf.mxu0
      %v917 = vadd.f32 0.0, %v916
      %v918 = vpop.f32.mrf.mxu0
      %v919 = vpop.f32.mrf.mxu0
      %v920 = vadd.f32 0.0, %v919
      %v921 = vpop.f32.mrf.mxu0
      %922 = vmatprep.mubr.bf16.mxu0 0
      %923 = vmatmul.mubr.bf16.gmra.mxu0 %v694
      %v924 = vpop.f32.mrf.mxu0
      %v925 = vadd.f32 0.0, %v924
      %v926 = vpop.f32.mrf.mxu0
      %v927 = vpop.f32.mrf.mxu0
      %v928 = vadd.f32 0.0, %v927
      %v929 = vpop.f32.mrf.mxu0
      %930 = vmatprep.mubr.bf16.mxu0 0
      %931 = vmatmul.mubr.bf16.gmra.mxu0 %v695
      %v932 = vpop.f32.mrf.mxu0
      %v933 = vadd.f32 0.0, %v932
      %v934 = vpop.f32.mrf.mxu0
      %v935 = vpop.f32.mrf.mxu0
      %v936 = vadd.f32 0.0, %v935
      %v937 = vpop.f32.mrf.mxu0
      %938 = vmatprep.mubr.bf16.mxu0 0
      %939 = vmatmul.mubr.bf16.gmra.mxu0 %v696
      %v940 = vpop.f32.mrf.mxu0
      %v941 = vadd.f32 0.0, %v940
      %v942 = vpop.f32.mrf.mxu0
      %v943 = vpop.f32.mrf.mxu0
      %v944 = vadd.f32 0.0, %v943
      %v945 = vpop.f32.mrf.mxu0
      %946 = vmatprep.mubr.bf16.mxu0 0
      %947 = vmatmul.mubr.bf16.gmra.mxu0 %v697
      %v948 = vpop.f32.mrf.mxu0
      %v949 = vadd.f32 0.0, %v948
      %v950 = vpop.f32.mrf.mxu0
      %v951 = vpop.f32.mrf.mxu0
      %v952 = vadd.f32 0.0, %v951
      %v953 = vpop.f32.mrf.mxu0
      %954 = vmatprep.mubr.bf16.mxu0 0
      %955 = vmatmul.mubr.bf16.gmra.mxu0 %v698
      %v956 = vpop.f32.mrf.mxu0
      %v957 = vadd.f32 0.0, %v956
      %v958 = vpop.f32.mrf.mxu0
      %v959 = vpop.f32.mrf.mxu0
      %v960 = vadd.f32 0.0, %v959
      %v961 = vpop.f32.mrf.mxu0
      %962 = vmatprep.mubr.bf16.mxu0 0
      %963 = vmatmul.mubr.bf16.gmra.mxu0 %v699
      %v964 = vpop.f32.mrf.mxu0
      %v965 = vadd.f32 0.0, %v964
      %v966 = vpop.f32.mrf.mxu0
      %v967 = vpop.f32.mrf.mxu0
      %v968 = vadd.f32 0.0, %v967
      %v969 = vpop.f32.mrf.mxu0
      %970 = vmatprep.mubr.bf16.mxu0 0
      %971 = vmatmul.mubr.bf16.gmra.mxu0 %v700
      %v972 = vpop.f32.mrf.mxu0
      %v973 = vadd.f32 0.0, %v972
      %v974 = vpop.f32.mrf.mxu0
      %v975 = vpop.f32.mrf.mxu0
      %v976 = vadd.f32 0.0, %v975
      %v977 = vpop.f32.mrf.mxu0
      %978 = vmatprep.mubr.bf16.mxu0 0
      %979 = vmatmul.mubr.bf16.gmra.mxu0 %v701
      %v980 = vpop.f32.mrf.mxu0
      %v981 = vadd.f32 0.0, %v980
      %v982 = vpop.f32.mrf.mxu0
      %v983 = vpop.f32.mrf.mxu0
      %v984 = vadd.f32 0.0, %v983
      %v985 = vpop.f32.mrf.mxu0
      %986 = vmatprep.mubr.bf16.mxu0 0
      %987 = vmatmul.mubr.bf16.gmra.mxu0 %v702
      %v988 = vpop.f32.mrf.mxu0
      %v989 = vadd.f32 0.0, %v988
      %v990 = vpop.f32.mrf.mxu0
      %v991 = vpop.f32.mrf.mxu0
      %v992 = vadd.f32 0.0, %v991
      %v993 = vpop.f32.mrf.mxu0
      %994 = vmatprep.mubr.bf16.mxu0 0
      %995 = vmatmul.mubr.bf16.gmra.mxu0 %v703
      %v996 = vpop.f32.mrf.mxu0
      %v997 = vadd.f32 0.0, %v996
      %v998 = vpop.f32.mrf.mxu0
      %v999 = vpop.f32.mrf.mxu0
      %v1000 = vadd.f32 0.0, %v999
      %v1001 = vpop.f32.mrf.mxu0
      %1002 = vmatprep.mubr.bf16.mxu0 0
      %1003 = vmatmul.mubr.bf16.gmra.mxu0 %v704
      %v1004 = vpop.f32.mrf.mxu0
      %v1005 = vadd.f32 0.0, %v1004
      %v1006 = vpop.f32.mrf.mxu0
      %v1007 = vpop.f32.mrf.mxu0
      %v1008 = vadd.f32 0.0, %v1007
      %v1009 = vpop.f32.mrf.mxu0
      %1010 = vmatprep.mubr.bf16.mxu0 0
      %1011 = vmatmul.mubr.bf16.gmra.mxu0 %v705
      %v1012 = vpop.f32.mrf.mxu0
      %v1013 = vadd.f32 0.0, %v1012
      %v1014 = vpop.f32.mrf.mxu0
      %v1015 = vpop.f32.mrf.mxu0
      %v1016 = vadd.f32 0.0, %v1015
      %v1017 = vpop.f32.mrf.mxu0
      %1018 = vmatprep.mubr.bf16.mxu0 0
      %1019 = vmatmul.mubr.bf16.gmra.mxu0 %v706
      %v1020 = vpop.f32.mrf.mxu0
      %v1021 = vadd.f32 0.0, %v1020
      %v1022 = vpop.f32.mrf.mxu0
      %v1023 = vpop.f32.mrf.mxu0
      %v1024 = vadd.f32 0.0, %v1023
      %v1025 = vpop.f32.mrf.mxu0
      %1026 = vmatprep.mubr.bf16.mxu0 0
      %1027 = vmatmul.mubr.bf16.gmra.mxu0 %v707
      %v1028 = vpop.f32.mrf.mxu0
      %v1029 = vadd.f32 0.0, %v1028
      %v1030 = vpop.f32.mrf.mxu0
      %v1031 = vpop.f32.mrf.mxu0
      %v1032 = vadd.f32 0.0, %v1031
      %v1033 = vpop.f32.mrf.mxu0
      %1034 = vmatprep.mubr.bf16.mxu0 0
      %1035 = vmatmul.mubr.bf16.gmra.mxu0 %v708
      %v1036 = vpop.f32.mrf.mxu0
      %v1037 = vadd.f32 0.0, %v1036
      %v1038 = vpop.f32.mrf.mxu0
      %v1039 = vpop.f32.mrf.mxu0
      %v1040 = vadd.f32 0.0, %v1039
      %v1041 = vpop.f32.mrf.mxu0
      %1042 = vmatprep.mubr.bf16.mxu0 0
      %1043 = vmatmul.mubr.bf16.gmra.mxu0 %v709
      %v1044 = vpop.f32.mrf.mxu0
      %v1045 = vadd.f32 0.0, %v1044
      %v1046 = vpop.f32.mrf.mxu0
      %v1047 = vpop.f32.mrf.mxu0
      %v1048 = vadd.f32 0.0, %v1047
      %v1049 = vpop.f32.mrf.mxu0
      %1050 = vmatprep.mubr.bf16.mxu0 0
      %1051 = vmatmul.mubr.bf16.gmra.mxu0 %v710
      %v1052 = vpop.f32.mrf.mxu0
      %v1053 = vadd.f32 0.0, %v1052
      %v1054 = vpop.f32.mrf.mxu0
      %v1055 = vpop.f32.mrf.mxu0
      %v1056 = vadd.f32 0.0, %v1055
      %v1057 = vpop.f32.mrf.mxu0
      %1058 = vmatprep.mubr.bf16.mxu0 0
      %1059 = vmatmul.mubr.bf16.gmra.mxu0 %v711
      %v1060 = vpop.f32.mrf.mxu0
      %v1061 = vadd.f32 0.0, %v1060
      %v1062 = vpop.f32.mrf.mxu0
      %v1063 = vpop.f32.mrf.mxu0
      %v1064 = vadd.f32 0.0, %v1063
      %v1065 = vpop.f32.mrf.mxu0
      %1066 = vmatprep.mubr.bf16.mxu0 0
      %1067 = vmatmul.mubr.bf16.gmra.mxu0 %v712
      %v1068 = vpop.f32.mrf.mxu0
      %v1069 = vadd.f32 0.0, %v1068
      %v1070 = vpop.f32.mrf.mxu0
      %v1071 = vpop.f32.mrf.mxu0
      %v1072 = vadd.f32 0.0, %v1071
      %v1073 = vpop.f32.mrf.mxu0
      %1074 = vmatprep.mubr.bf16.mxu0 0
      %1075 = vmatmul.mubr.bf16.gmra.mxu0 %v713
      %v1076 = vpop.f32.mrf.mxu0
      %v1077 = vadd.f32 0.0, %v1076
      %v1078 = vpop.f32.mrf.mxu0
      %v1079 = vpop.f32.mrf.mxu0
      %v1080 = vadd.f32 0.0, %v1079
      %v1081 = vpop.f32.mrf.mxu0
      %1082 = vdwg.mxu0
      %v1083 = vadd.f32 %v410, %v829
      %v1084 = vadd.f32 %v411, %v832
      %v1085 = vadd.f32 %v412, %v837
      %v1086 = vadd.f32 %v413, %v840
      %v1087 = vadd.f32 %v414, %v845
      %v1088 = vadd.f32 %v415, %v848
      %v1089 = vadd.f32 %v416, %v853
      %v1090 = vadd.f32 %v417, %v856
      %v1091 = vadd.f32 %v418, %v861
      %v1092 = vadd.f32 %v419, %v864
      %v1093 = vadd.f32 %v420, %v869
      %v1094 = vadd.f32 %v421, %v872
      %v1095 = vadd.f32 %v422, %v877
      %v1096 = vadd.f32 %v423, %v880
      %v1097 = vadd.f32 %v424, %v885
      %v1098 = vadd.f32 %v425, %v888
      %v1099 = vadd.f32 %v426, %v893
      %v1100 = vadd.f32 %v427, %v896
      %v1101 = vadd.f32 %v428, %v901
      %v1102 = vadd.f32 %v429, %v904
      %v1103 = vadd.f32 %v430, %v909
      %v1104 = vadd.f32 %v431, %v912
      %v1105 = vadd.f32 %v432, %v917
      %v1106 = vadd.f32 %v433, %v920
      %v1107 = vadd.f32 %v434, %v925
      %v1108 = vadd.f32 %v435, %v928
      %v1109 = vadd.f32 %v436, %v933
      %v1110 = vadd.f32 %v437, %v936
      %v1111 = vadd.f32 %v438, %v941
      %v1112 = vadd.f32 %v439, %v944
      %v1113 = vadd.f32 %v440, %v949
      %v1114 = vadd.f32 %v441, %v952
      %v1115 = vadd.f32 %v442, %v957
      %v1116 = vadd.f32 %v443, %v960
      %v1117 = vadd.f32 %v444, %v965
      %v1118 = vadd.f32 %v445, %v968
      %v1119 = vadd.f32 %v446, %v973
      %v1120 = vadd.f32 %v447, %v976
      %v1121 = vadd.f32 %v448, %v981
      %v1122 = vadd.f32 %v449, %v984
      %v1123 = vadd.f32 %v450, %v989
      %v1124 = vadd.f32 %v451, %v992
      %v1125 = vadd.f32 %v452, %v997
      %v1126 = vadd.f32 %v453, %v1000
      %v1127 = vadd.f32 %v454, %v1005
      %v1128 = vadd.f32 %v455, %v1008
      %v1129 = vadd.f32 %v456, %v1013
      %v1130 = vadd.f32 %v457, %v1016
      %v1131 = vadd.f32 %v458, %v1021
      %v1132 = vadd.f32 %v459, %v1024
      %v1133 = vadd.f32 %v460, %v1029
      %v1134 = vadd.f32 %v461, %v1032
      %v1135 = vadd.f32 %v462, %v1037
      %v1136 = vadd.f32 %v463, %v1040
      %v1137 = vadd.f32 %v464, %v1045
      %v1138 = vadd.f32 %v465, %v1048
      %v1139 = vadd.f32 %v466, %v1053
      %v1140 = vadd.f32 %v467, %v1056
      %v1141 = vadd.f32 %v468, %v1061
      %v1142 = vadd.f32 %v469, %v1064
      %v1143 = vadd.f32 %v470, %v1069
      %v1144 = vadd.f32 %v471, %v1072
      %v1145 = vadd.f32 %v472, %v1077
      %v1146 = vadd.f32 %v473, %v1080
      %1147 = vst [vmem:[#allocation2] sm:$0xff] %v1083
      %1148 = vst [vmem:[#allocation2 + $0x8] sm:$0xff] %v1084
      %1149 = vst [vmem:[#allocation2 + $0x10] sm:$0xff] %v1085
      %1150 = vst [vmem:[#allocation2 + $0x18] sm:$0xff] %v1086
      %1151 = vst [vmem:[#allocation2 + $0x20] sm:$0xff] %v1087
      %1152 = vst [vmem:[#allocation2 + $0x28] sm:$0xff] %v1088
      %1153 = vst [vmem:[#allocation2 + $0x30] sm:$0xff] %v1089
      %1154 = vst [vmem:[#allocation2 + $0x38] sm:$0xff] %v1090
      %1155 = vst [vmem:[#allocation2 + $0x40] sm:$0xff] %v1091
      %1156 = vst [vmem:[#allocation2 + $0x48] sm:$0xff] %v1092
      %1157 = vst [vmem:[#allocation2 + $0x50] sm:$0xff] %v1093
      %1158 = vst [vmem:[#allocation2 + $0x58] sm:$0xff] %v1094
      %1159 = vst [vmem:[#allocation2 + $0x60] sm:$0xff] %v1095
      %1160 = vst [vmem:[#allocation2 + $0x68] sm:$0xff] %v1096
      %1161 = vst [vmem:[#allocation2 + $0x70] sm:$0xff] %v1097
      %1162 = vst [vmem:[#allocation2 + $0x78] sm:$0xff] %v1098
      %1163 = vst [vmem:[#allocation2 + $0x80] sm:$0xff] %v1099
      %1164 = vst [vmem:[#allocation2 + $0x88] sm:$0xff] %v1100
      %1165 = vst [vmem:[#allocation2 + $0x90] sm:$0xff] %v1101
      %1166 = vst [vmem:[#allocation2 + $0x98] sm:$0xff] %v1102
      %1167 = vst [vmem:[#allocation2 + $0xa0] sm:$0xff] %v1103
      %1168 = vst [vmem:[#allocation2 + $0xa8] sm:$0xff] %v1104
      %1169 = vst [vmem:[#allocation2 + $0xb0] sm:$0xff] %v1105
      %1170 = vst [vmem:[#allocation2 + $0xb8] sm:$0xff] %v1106
      %1171 = vst [vmem:[#allocation2 + $0xc0] sm:$0xff] %v1107
      %1172 = vst [vmem:[#allocation2 + $0xc8] sm:$0xff] %v1108
      %1173 = vst [vmem:[#allocation2 + $0xd0] sm:$0xff] %v1109
      %1174 = vst [vmem:[#allocation2 + $0xd8] sm:$0xff] %v1110
      %1175 = vst [vmem:[#allocation2 + $0xe0] sm:$0xff] %v1111
      %1176 = vst [vmem:[#allocation2 + $0xe8] sm:$0xff] %v1112
      %1177 = vst [vmem:[#allocation2 + $0xf0] sm:$0xff] %v1113
      %1178 = vst [vmem:[#allocation2 + $0xf8] sm:$0xff] %v1114
      %1179 = vst [vmem:[#allocation2 + $0x100] sm:$0xff] %v1115
      %1180 = vst [vmem:[#allocation2 + $0x108] sm:$0xff] %v1116
      %1181 = vst [vmem:[#allocation2 + $0x110] sm:$0xff] %v1117
      %1182 = vst [vmem:[#allocation2 + $0x118] sm:$0xff] %v1118
      %1183 = vst [vmem:[#allocation2 + $0x120] sm:$0xff] %v1119
      %1184 = vst [vmem:[#allocation2 + $0x128] sm:$0xff] %v1120
      %1185 = vst [vmem:[#allocation2 + $0x130] sm:$0xff] %v1121
      %1186 = vst [vmem:[#allocation2 + $0x138] sm:$0xff] %v1122
      %1187 = vst [vmem:[#allocation2 + $0x140] sm:$0xff] %v1123
      %1188 = vst [vmem:[#allocation2 + $0x148] sm:$0xff] %v1124
      %1189 = vst [vmem:[#allocation2 + $0x150] sm:$0xff] %v1125
      %1190 = vst [vmem:[#allocation2 + $0x158] sm:$0xff] %v1126
      %1191 = vst [vmem:[#allocation2 + $0x160] sm:$0xff] %v1127
      %1192 = vst [vmem:[#allocation2 + $0x168] sm:$0xff] %v1128
      %1193 = vst [vmem:[#allocation2 + $0x170] sm:$0xff] %v1129
      %1194 = vst [vmem:[#allocation2 + $0x178] sm:$0xff] %v1130
      %1195 = vst [vmem:[#allocation2 + $0x180] sm:$0xff] %v1131
      %1196 = vst [vmem:[#allocation2 + $0x188] sm:$0xff] %v1132
      %1197 = vst [vmem:[#allocation2 + $0x190] sm:$0xff] %v1133
      %1198 = vst [vmem:[#allocation2 + $0x198] sm:$0xff] %v1134
      %1199 = vst [vmem:[#allocation2 + $0x1a0] sm:$0xff] %v1135
      %1200 = vst [vmem:[#allocation2 + $0x1a8] sm:$0xff] %v1136
      %1201 = vst [vmem:[#allocation2 + $0x1b0] sm:$0xff] %v1137
      %1202 = vst [vmem:[#allocation2 + $0x1b8] sm:$0xff] %v1138
      %1203 = vst [vmem:[#allocation2 + $0x1c0] sm:$0xff] %v1139
      %1204 = vst [vmem:[#allocation2 + $0x1c8] sm:$0xff] %v1140
      %1205 = vst [vmem:[#allocation2 + $0x1d0] sm:$0xff] %v1141
      %1206 = vst [vmem:[#allocation2 + $0x1d8] sm:$0xff] %v1142
      %1207 = vst [vmem:[#allocation2 + $0x1e0] sm:$0xff] %v1143
      %1208 = vst [vmem:[#allocation2 + $0x1e8] sm:$0xff] %v1144
      %1209 = vst [vmem:[#allocation2 + $0x1f0] sm:$0xff] %v1145
      %1210 = vst [vmem:[#allocation2 + $0x1f8] sm:$0xff] %v1146
      // Predicated region
      $region45: #{matmul_fused.1} parent=39 // pred_check
        %p1211 = pneg %p342
      $region46: #{matmul_fused.1} parent=39 // pred_check_branch
        %1213 = sbr.rel (%p1211) target = $region48
      $region47: #{matmul_fused.1} parent=39 // pred_region
        %v1214 = vld [vmem:[#allocation2] sm:$0xff]
        %v1215 = vld [vmem:[#allocation2 + $0x8] sm:$0xff]
        %v1216 = vld [vmem:[#allocation2 + $0x10] sm:$0xff]
        %v1217 = vld [vmem:[#allocation2 + $0x18] sm:$0xff]
        %v1218 = vld [vmem:[#allocation2 + $0x20] sm:$0xff]
        %v1219 = vld [vmem:[#allocation2 + $0x28] sm:$0xff]
        %v1220 = vld [vmem:[#allocation2 + $0x30] sm:$0xff]
        %v1221 = vld [vmem:[#allocation2 + $0x38] sm:$0xff]
        %v1222 = vld [vmem:[#allocation2 + $0x40] sm:$0xff]
        %v1223 = vld [vmem:[#allocation2 + $0x48] sm:$0xff]
        %v1224 = vld [vmem:[#allocation2 + $0x50] sm:$0xff]
        %v1225 = vld [vmem:[#allocation2 + $0x58] sm:$0xff]
        %v1226 = vld [vmem:[#allocation2 + $0x60] sm:$0xff]
        %v1227 = vld [vmem:[#allocation2 + $0x68] sm:$0xff]
        %v1228 = vld [vmem:[#allocation2 + $0x70] sm:$0xff]
        %v1229 = vld [vmem:[#allocation2 + $0x78] sm:$0xff]
        %v1230 = vld [vmem:[#allocation2 + $0x80] sm:$0xff]
        %v1231 = vld [vmem:[#allocation2 + $0x88] sm:$0xff]
        %v1232 = vld [vmem:[#allocation2 + $0x90] sm:$0xff]
        %v1233 = vld [vmem:[#allocation2 + $0x98] sm:$0xff]
        %v1234 = vld [vmem:[#allocation2 + $0xa0] sm:$0xff]
        %v1235 = vld [vmem:[#allocation2 + $0xa8] sm:$0xff]
        %v1236 = vld [vmem:[#allocation2 + $0xb0] sm:$0xff]
        %v1237 = vld [vmem:[#allocation2 + $0xb8] sm:$0xff]
        %v1238 = vld [vmem:[#allocation2 + $0xc0] sm:$0xff]
        %v1239 = vld [vmem:[#allocation2 + $0xc8] sm:$0xff]
        %v1240 = vld [vmem:[#allocation2 + $0xd0] sm:$0xff]
        %v1241 = vld [vmem:[#allocation2 + $0xd8] sm:$0xff]
        %v1242 = vld [vmem:[#allocation2 + $0xe0] sm:$0xff]
        %v1243 = vld [vmem:[#allocation2 + $0xe8] sm:$0xff]
        %v1244 = vld [vmem:[#allocation2 + $0xf0] sm:$0xff]
        %v1245 = vld [vmem:[#allocation2 + $0xf8] sm:$0xff]
        %v1246 = vld [vmem:[#allocation2 + $0x100] sm:$0xff]
        %v1247 = vld [vmem:[#allocation2 + $0x108] sm:$0xff]
        %v1248 = vld [vmem:[#allocation2 + $0x110] sm:$0xff]
        %v1249 = vld [vmem:[#allocation2 + $0x118] sm:$0xff]
        %v1250 = vld [vmem:[#allocation2 + $0x120] sm:$0xff]
        %v1251 = vld [vmem:[#allocation2 + $0x128] sm:$0xff]
        %v1252 = vld [vmem:[#allocation2 + $0x130] sm:$0xff]
        %v1253 = vld [vmem:[#allocation2 + $0x138] sm:$0xff]
        %v1254 = vld [vmem:[#allocation2 + $0x140] sm:$0xff]
        %v1255 = vld [vmem:[#allocation2 + $0x148] sm:$0xff]
        %v1256 = vld [vmem:[#allocation2 + $0x150] sm:$0xff]
        %v1257 = vld [vmem:[#allocation2 + $0x158] sm:$0xff]
        %v1258 = vld [vmem:[#allocation2 + $0x160] sm:$0xff]
        %v1259 = vld [vmem:[#allocation2 + $0x168] sm:$0xff]
        %v1260 = vld [vmem:[#allocation2 + $0x170] sm:$0xff]
        %v1261 = vld [vmem:[#allocation2 + $0x178] sm:$0xff]
        %v1262 = vld [vmem:[#allocation2 + $0x180] sm:$0xff]
        %v1263 = vld [vmem:[#allocation2 + $0x188] sm:$0xff]
        %v1264 = vld [vmem:[#allocation2 + $0x190] sm:$0xff]
        %v1265 = vld [vmem:[#allocation2 + $0x198] sm:$0xff]
        %v1266 = vld [vmem:[#allocation2 + $0x1a0] sm:$0xff]
        %v1267 = vld [vmem:[#allocation2 + $0x1a8] sm:$0xff]
        %v1268 = vld [vmem:[#allocation2 + $0x1b0] sm:$0xff]
        %v1269 = vld [vmem:[#allocation2 + $0x1b8] sm:$0xff]
        %v1270 = vld [vmem:[#allocation2 + $0x1c0] sm:$0xff]
        %v1271 = vld [vmem:[#allocation2 + $0x1c8] sm:$0xff]
        %v1272 = vld [vmem:[#allocation2 + $0x1d0] sm:$0xff]
        %v1273 = vld [vmem:[#allocation2 + $0x1d8] sm:$0xff]
        %v1274 = vld [vmem:[#allocation2 + $0x1e0] sm:$0xff]
        %v1275 = vld [vmem:[#allocation2 + $0x1e8] sm:$0xff]
        %v1276 = vld [vmem:[#allocation2 + $0x1f0] sm:$0xff]
        %v1277 = vld [vmem:[#allocation2 + $0x1f8] sm:$0xff]
        %v1278 = vld [vmem:[%s325] sm:$0x1]
        %v1280 = vlaneseq
        %v1281 = vshrl.u32 %v1280, 7
        %v1282 = vsub.s32 0, %v1281
        %v1283 = vrot.slane %v1278, %v1282
        %v1285 = vmul.f32 %v1214, %v1283
        %v1286 = vmul.f32 %v1215, %v1283
        %v1287 = vmul.f32 %v1216, %v1283
        %v1288 = vmul.f32 %v1217, %v1283
        %v1289 = vmul.f32 %v1218, %v1283
        %v1290 = vmul.f32 %v1219, %v1283
        %v1291 = vmul.f32 %v1220, %v1283
        %v1292 = vmul.f32 %v1221, %v1283
        %v1293 = vmul.f32 %v1222, %v1283
        %v1294 = vmul.f32 %v1223, %v1283
        %v1295 = vmul.f32 %v1224, %v1283
        %v1296 = vmul.f32 %v1225, %v1283
        %v1297 = vmul.f32 %v1226, %v1283
        %v1298 = vmul.f32 %v1227, %v1283
        %v1299 = vmul.f32 %v1228, %v1283
        %v1300 = vmul.f32 %v1229, %v1283
        %v1301 = vmul.f32 %v1230, %v1283
        %v1302 = vmul.f32 %v1231, %v1283
        %v1303 = vmul.f32 %v1232, %v1283
        %v1304 = vmul.f32 %v1233, %v1283
        %v1305 = vmul.f32 %v1234, %v1283
        %v1306 = vmul.f32 %v1235, %v1283
        %v1307 = vmul.f32 %v1236, %v1283
        %v1308 = vmul.f32 %v1237, %v1283
        %v1309 = vmul.f32 %v1238, %v1283
        %v1310 = vmul.f32 %v1239, %v1283
        %v1311 = vmul.f32 %v1240, %v1283
        %v1312 = vmul.f32 %v1241, %v1283
        %v1313 = vmul.f32 %v1242, %v1283
        %v1314 = vmul.f32 %v1243, %v1283
        %v1315 = vmul.f32 %v1244, %v1283
        %v1316 = vmul.f32 %v1245, %v1283
        %v1317 = vmul.f32 %v1246, %v1283
        %v1318 = vmul.f32 %v1247, %v1283
        %v1319 = vmul.f32 %v1248, %v1283
        %v1320 = vmul.f32 %v1249, %v1283
        %v1321 = vmul.f32 %v1250, %v1283
        %v1322 = vmul.f32 %v1251, %v1283
        %v1323 = vmul.f32 %v1252, %v1283
        %v1324 = vmul.f32 %v1253, %v1283
        %v1325 = vmul.f32 %v1254, %v1283
        %v1326 = vmul.f32 %v1255, %v1283
        %v1327 = vmul.f32 %v1256, %v1283
        %v1328 = vmul.f32 %v1257, %v1283
        %v1329 = vmul.f32 %v1258, %v1283
        %v1330 = vmul.f32 %v1259, %v1283
        %v1331 = vmul.f32 %v1260, %v1283
        %v1332 = vmul.f32 %v1261, %v1283
        %v1333 = vmul.f32 %v1262, %v1283
        %v1334 = vmul.f32 %v1263, %v1283
        %v1335 = vmul.f32 %v1264, %v1283
        %v1336 = vmul.f32 %v1265, %v1283
        %v1337 = vmul.f32 %v1266, %v1283
        %v1338 = vmul.f32 %v1267, %v1283
        %v1339 = vmul.f32 %v1268, %v1283
        %v1340 = vmul.f32 %v1269, %v1283
        %v1341 = vmul.f32 %v1270, %v1283
        %v1342 = vmul.f32 %v1271, %v1283
        %v1343 = vmul.f32 %v1272, %v1283
        %v1344 = vmul.f32 %v1273, %v1283
        %v1345 = vmul.f32 %v1274, %v1283
        %v1346 = vmul.f32 %v1275, %v1283
        %v1347 = vmul.f32 %v1276, %v1283
        %v1348 = vmul.f32 %v1277, %v1283
        %v1349 = vld [vmem:[%s328] sm:$0x1]
        %v1351 = vlaneseq
        %v1352 = vshrl.u32 %v1351, 7
        %v1353 = vsub.s32 0, %v1352
        %v1354 = vrot.slane %v1349, %v1353
        %v1356 = vadd.f32 %v1285, %v1354
        %v1357 = vadd.f32 %v1286, %v1354
        %v1358 = vadd.f32 %v1287, %v1354
        %v1359 = vadd.f32 %v1288, %v1354
        %v1360 = vadd.f32 %v1289, %v1354
        %v1361 = vadd.f32 %v1290, %v1354
        %v1362 = vadd.f32 %v1291, %v1354
        %v1363 = vadd.f32 %v1292, %v1354
        %v1364 = vadd.f32 %v1293, %v1354
        %v1365 = vadd.f32 %v1294, %v1354
        %v1366 = vadd.f32 %v1295, %v1354
        %v1367 = vadd.f32 %v1296, %v1354
        %v1368 = vadd.f32 %v1297, %v1354
        %v1369 = vadd.f32 %v1298, %v1354
        %v1370 = vadd.f32 %v1299, %v1354
        %v1371 = vadd.f32 %v1300, %v1354
        %v1372 = vadd.f32 %v1301, %v1354
        %v1373 = vadd.f32 %v1302, %v1354
        %v1374 = vadd.f32 %v1303, %v1354
        %v1375 = vadd.f32 %v1304, %v1354
        %v1376 = vadd.f32 %v1305, %v1354
        %v1377 = vadd.f32 %v1306, %v1354
        %v1378 = vadd.f32 %v1307, %v1354
        %v1379 = vadd.f32 %v1308, %v1354
        %v1380 = vadd.f32 %v1309, %v1354
        %v1381 = vadd.f32 %v1310, %v1354
        %v1382 = vadd.f32 %v1311, %v1354
        %v1383 = vadd.f32 %v1312, %v1354
        %v1384 = vadd.f32 %v1313, %v1354
        %v1385 = vadd.f32 %v1314, %v1354
        %v1386 = vadd.f32 %v1315, %v1354
        %v1387 = vadd.f32 %v1316, %v1354
        %v1388 = vadd.f32 %v1317, %v1354
        %v1389 = vadd.f32 %v1318, %v1354
        %v1390 = vadd.f32 %v1319, %v1354
        %v1391 = vadd.f32 %v1320, %v1354
        %v1392 = vadd.f32 %v1321, %v1354
        %v1393 = vadd.f32 %v1322, %v1354
        %v1394 = vadd.f32 %v1323, %v1354
        %v1395 = vadd.f32 %v1324, %v1354
        %v1396 = vadd.f32 %v1325, %v1354
        %v1397 = vadd.f32 %v1326, %v1354
        %v1398 = vadd.f32 %v1327, %v1354
        %v1399 = vadd.f32 %v1328, %v1354
        %v1400 = vadd.f32 %v1329, %v1354
        %v1401 = vadd.f32 %v1330, %v1354
        %v1402 = vadd.f32 %v1331, %v1354
        %v1403 = vadd.f32 %v1332, %v1354
        %v1404 = vadd.f32 %v1333, %v1354
        %v1405 = vadd.f32 %v1334, %v1354
        %v1406 = vadd.f32 %v1335, %v1354
        %v1407 = vadd.f32 %v1336, %v1354
        %v1408 = vadd.f32 %v1337, %v1354
        %v1409 = vadd.f32 %v1338, %v1354
        %v1410 = vadd.f32 %v1339, %v1354
        %v1411 = vadd.f32 %v1340, %v1354
        %v1412 = vadd.f32 %v1341, %v1354
        %v1413 = vadd.f32 %v1342, %v1354
        %v1414 = vadd.f32 %v1343, %v1354
        %v1415 = vadd.f32 %v1344, %v1354
        %v1416 = vadd.f32 %v1345, %v1354
        %v1417 = vadd.f32 %v1346, %v1354
        %v1418 = vadd.f32 %v1347, %v1354
        %v1419 = vadd.f32 %v1348, %v1354
        %vm1420 = vcmp.ge.f32.partialorder %v1356, 0.0
        %vm1421 = vcmp.ge.f32.partialorder %v1357, 0.0
        %vm1422 = vcmp.ge.f32.partialorder %v1358, 0.0
        %vm1423 = vcmp.ge.f32.partialorder %v1359, 0.0
        %vm1424 = vcmp.ge.f32.partialorder %v1360, 0.0
        %vm1425 = vcmp.ge.f32.partialorder %v1361, 0.0
        %vm1426 = vcmp.ge.f32.partialorder %v1362, 0.0
        %vm1427 = vcmp.ge.f32.partialorder %v1363, 0.0
        %vm1428 = vcmp.ge.f32.partialorder %v1364, 0.0
        %vm1429 = vcmp.ge.f32.partialorder %v1365, 0.0
        %vm1430 = vcmp.ge.f32.partialorder %v1366, 0.0
        %vm1431 = vcmp.ge.f32.partialorder %v1367, 0.0
        %vm1432 = vcmp.ge.f32.partialorder %v1368, 0.0
        %vm1433 = vcmp.ge.f32.partialorder %v1369, 0.0
        %vm1434 = vcmp.ge.f32.partialorder %v1370, 0.0
        %vm1435 = vcmp.ge.f32.partialorder %v1371, 0.0
        %vm1436 = vcmp.ge.f32.partialorder %v1372, 0.0
        %vm1437 = vcmp.ge.f32.partialorder %v1373, 0.0
        %vm1438 = vcmp.ge.f32.partialorder %v1374, 0.0
        %vm1439 = vcmp.ge.f32.partialorder %v1375, 0.0
        %vm1440 = vcmp.ge.f32.partialorder %v1376, 0.0
        %vm1441 = vcmp.ge.f32.partialorder %v1377, 0.0
        %vm1442 = vcmp.ge.f32.partialorder %v1378, 0.0
        %vm1443 = vcmp.ge.f32.partialorder %v1379, 0.0
        %vm1444 = vcmp.ge.f32.partialorder %v1380, 0.0
        %vm1445 = vcmp.ge.f32.partialorder %v1381, 0.0
        %vm1446 = vcmp.ge.f32.partialorder %v1382, 0.0
        %vm1447 = vcmp.ge.f32.partialorder %v1383, 0.0
        %vm1448 = vcmp.ge.f32.partialorder %v1384, 0.0
        %vm1449 = vcmp.ge.f32.partialorder %v1385, 0.0
        %vm1450 = vcmp.ge.f32.partialorder %v1386, 0.0
        %vm1451 = vcmp.ge.f32.partialorder %v1387, 0.0
        %vm1452 = vcmp.ge.f32.partialorder %v1388, 0.0
        %vm1453 = vcmp.ge.f32.partialorder %v1389, 0.0
        %vm1454 = vcmp.ge.f32.partialorder %v1390, 0.0
        %vm1455 = vcmp.ge.f32.partialorder %v1391, 0.0
        %vm1456 = vcmp.ge.f32.partialorder %v1392, 0.0
        %vm1457 = vcmp.ge.f32.partialorder %v1393, 0.0
        %vm1458 = vcmp.ge.f32.partialorder %v1394, 0.0
        %vm1459 = vcmp.ge.f32.partialorder %v1395, 0.0
        %vm1460 = vcmp.ge.f32.partialorder %v1396, 0.0
        %vm1461 = vcmp.ge.f32.partialorder %v1397, 0.0
        %vm1462 = vcmp.ge.f32.partialorder %v1398, 0.0
        %vm1463 = vcmp.ge.f32.partialorder %v1399, 0.0
        %vm1464 = vcmp.ge.f32.partialorder %v1400, 0.0
        %vm1465 = vcmp.ge.f32.partialorder %v1401, 0.0
        %vm1466 = vcmp.ge.f32.partialorder %v1402, 0.0
        %vm1467 = vcmp.ge.f32.partialorder %v1403, 0.0
        %vm1468 = vcmp.ge.f32.partialorder %v1404, 0.0
        %vm1469 = vcmp.ge.f32.partialorder %v1405, 0.0
        %vm1470 = vcmp.ge.f32.partialorder %v1406, 0.0
        %vm1471 = vcmp.ge.f32.partialorder %v1407, 0.0
        %vm1472 = vcmp.ge.f32.partialorder %v1408, 0.0
        %vm1473 = vcmp.ge.f32.partialorder %v1409, 0.0
        %vm1474 = vcmp.ge.f32.partialorder %v1410, 0.0
        %vm1475 = vcmp.ge.f32.partialorder %v1411, 0.0
        %vm1476 = vcmp.ge.f32.partialorder %v1412, 0.0
        %vm1477 = vcmp.ge.f32.partialorder %v1413, 0.0
        %vm1478 = vcmp.ge.f32.partialorder %v1414, 0.0
        %vm1479 = vcmp.ge.f32.partialorder %v1415, 0.0
        %vm1480 = vcmp.ge.f32.partialorder %v1416, 0.0
        %vm1481 = vcmp.ge.f32.partialorder %v1417, 0.0
        %vm1482 = vcmp.ge.f32.partialorder %v1418, 0.0
        %vm1483 = vcmp.ge.f32.partialorder %v1419, 0.0
        %v1484 = vld [vmem:[%s331] sm:$0x1]
        %v1486 = vlaneseq
        %v1487 = vshrl.u32 %v1486, 7
        %v1488 = vsub.s32 0, %v1487
        %v1489 = vrot.slane %v1484, %v1488
        %v1491 = vmul.f32 %v1489, %v1356
        %v1492 = vmul.f32 %v1489, %v1357
        %v1493 = vmul.f32 %v1489, %v1358
        %v1494 = vmul.f32 %v1489, %v1359
        %v1495 = vmul.f32 %v1489, %v1360
        %v1496 = vmul.f32 %v1489, %v1361
        %v1497 = vmul.f32 %v1489, %v1362
        %v1498 = vmul.f32 %v1489, %v1363
        %v1499 = vmul.f32 %v1489, %v1364
        %v1500 = vmul.f32 %v1489, %v1365
        %v1501 = vmul.f32 %v1489, %v1366
        %v1502 = vmul.f32 %v1489, %v1367
        %v1503 = vmul.f32 %v1489, %v1368
        %v1504 = vmul.f32 %v1489, %v1369
        %v1505 = vmul.f32 %v1489, %v1370
        %v1506 = vmul.f32 %v1489, %v1371
        %v1507 = vmul.f32 %v1489, %v1372
        %v1508 = vmul.f32 %v1489, %v1373
        %v1509 = vmul.f32 %v1489, %v1374
        %v1510 = vmul.f32 %v1489, %v1375
        %v1511 = vmul.f32 %v1489, %v1376
        %v1512 = vmul.f32 %v1489, %v1377
        %v1513 = vmul.f32 %v1489, %v1378
        %v1514 = vmul.f32 %v1489, %v1379
        %v1515 = vmul.f32 %v1489, %v1380
        %v1516 = vmul.f32 %v1489, %v1381
        %v1517 = vmul.f32 %v1489, %v1382
        %v1518 = vmul.f32 %v1489, %v1383
        %v1519 = vmul.f32 %v1489, %v1384
        %v1520 = vmul.f32 %v1489, %v1385
        %v1521 = vmul.f32 %v1489, %v1386
        %v1522 = vmul.f32 %v1489, %v1387
        %v1523 = vmul.f32 %v1489, %v1388
        %v1524 = vmul.f32 %v1489, %v1389
        %v1525 = vmul.f32 %v1489, %v1390
        %v1526 = vmul.f32 %v1489, %v1391
        %v1527 = vmul.f32 %v1489, %v1392
        %v1528 = vmul.f32 %v1489, %v1393
        %v1529 = vmul.f32 %v1489, %v1394
        %v1530 = vmul.f32 %v1489, %v1395
        %v1531 = vmul.f32 %v1489, %v1396
        %v1532 = vmul.f32 %v1489, %v1397
        %v1533 = vmul.f32 %v1489, %v1398
        %v1534 = vmul.f32 %v1489, %v1399
        %v1535 = vmul.f32 %v1489, %v1400
        %v1536 = vmul.f32 %v1489, %v1401
        %v1537 = vmul.f32 %v1489, %v1402
        %v1538 = vmul.f32 %v1489, %v1403
        %v1539 = vmul.f32 %v1489, %v1404
        %v1540 = vmul.f32 %v1489, %v1405
        %v1541 = vmul.f32 %v1489, %v1406
        %v1542 = vmul.f32 %v1489, %v1407
        %v1543 = vmul.f32 %v1489, %v1408
        %v1544 = vmul.f32 %v1489, %v1409
        %v1545 = vmul.f32 %v1489, %v1410
        %v1546 = vmul.f32 %v1489, %v1411
        %v1547 = vmul.f32 %v1489, %v1412
        %v1548 = vmul.f32 %v1489, %v1413
        %v1549 = vmul.f32 %v1489, %v1414
        %v1550 = vmul.f32 %v1489, %v1415
        %v1551 = vmul.f32 %v1489, %v1416
        %v1552 = vmul.f32 %v1489, %v1417
        %v1553 = vmul.f32 %v1489, %v1418
        %v1554 = vmul.f32 %v1489, %v1419
        %v1555 = vsel %vm1420, %v1356, %v1491
        %v1556 = vsel %vm1421, %v1357, %v1492
        %v1557 = vsel %vm1422, %v1358, %v1493
        %v1558 = vsel %vm1423, %v1359, %v1494
        %v1559 = vsel %vm1424, %v1360, %v1495
        %v1560 = vsel %vm1425, %v1361, %v1496
        %v1561 = vsel %vm1426, %v1362, %v1497
        %v1562 = vsel %vm1427, %v1363, %v1498
        %v1563 = vsel %vm1428, %v1364, %v1499
        %v1564 = vsel %vm1429, %v1365, %v1500
        %v1565 = vsel %vm1430, %v1366, %v1501
        %v1566 = vsel %vm1431, %v1367, %v1502
        %v1567 = vsel %vm1432, %v1368, %v1503
        %v1568 = vsel %vm1433, %v1369, %v1504
        %v1569 = vsel %vm1434, %v1370, %v1505
        %v1570 = vsel %vm1435, %v1371, %v1506
        %v1571 = vsel %vm1436, %v1372, %v1507
        %v1572 = vsel %vm1437, %v1373, %v1508
        %v1573 = vsel %vm1438, %v1374, %v1509
        %v1574 = vsel %vm1439, %v1375, %v1510
        %v1575 = vsel %vm1440, %v1376, %v1511
        %v1576 = vsel %vm1441, %v1377, %v1512
        %v1577 = vsel %vm1442, %v1378, %v1513
        %v1578 = vsel %vm1443, %v1379, %v1514
        %v1579 = vsel %vm1444, %v1380, %v1515
        %v1580 = vsel %vm1445, %v1381, %v1516
        %v1581 = vsel %vm1446, %v1382, %v1517
        %v1582 = vsel %vm1447, %v1383, %v1518
        %v1583 = vsel %vm1448, %v1384, %v1519
        %v1584 = vsel %vm1449, %v1385, %v1520
        %v1585 = vsel %vm1450, %v1386, %v1521
        %v1586 = vsel %vm1451, %v1387, %v1522
        %v1587 = vsel %vm1452, %v1388, %v1523
        %v1588 = vsel %vm1453, %v1389, %v1524
        %v1589 = vsel %vm1454, %v1390, %v1525
        %v1590 = vsel %vm1455, %v1391, %v1526
        %v1591 = vsel %vm1456, %v1392, %v1527
        %v1592 = vsel %vm1457, %v1393, %v1528
        %v1593 = vsel %vm1458, %v1394, %v1529
        %v1594 = vsel %vm1459, %v1395, %v1530
        %v1595 = vsel %vm1460, %v1396, %v1531
        %v1596 = vsel %vm1461, %v1397, %v1532
        %v1597 = vsel %vm1462, %v1398, %v1533
        %v1598 = vsel %vm1463, %v1399, %v1534
        %v1599 = vsel %vm1464, %v1400, %v1535
        %v1600 = vsel %vm1465, %v1401, %v1536
        %v1601 = vsel %vm1466, %v1402, %v1537
        %v1602 = vsel %vm1467, %v1403, %v1538
        %v1603 = vsel %vm1468, %v1404, %v1539
        %v1604 = vsel %vm1469, %v1405, %v1540
        %v1605 = vsel %vm1470, %v1406, %v1541
        %v1606 = vsel %vm1471, %v1407, %v1542
        %v1607 = vsel %vm1472, %v1408, %v1543
        %v1608 = vsel %vm1473, %v1409, %v1544
        %v1609 = vsel %vm1474, %v1410, %v1545
        %v1610 = vsel %vm1475, %v1411, %v1546
        %v1611 = vsel %vm1476, %v1412, %v1547
        %v1612 = vsel %vm1477, %v1413, %v1548
        %v1613 = vsel %vm1478, %v1414, %v1549
        %v1614 = vsel %vm1479, %v1415, %v1550
        %v1615 = vsel %vm1480, %v1416, %v1551
        %v1616 = vsel %vm1481, %v1417, %v1552
        %v1617 = vsel %vm1482, %v1418, %v1553
        %v1618 = vsel %vm1483, %v1419, %v1554
        %1619 = vst [vmem:[%s339] sm:$0xff] %v1555
        %1620 = vst [vmem:[%s339 + $0x8] sm:$0xff] %v1556
        %1621 = vst [vmem:[%s339 + $0x10] sm:$0xff] %v1557
        %1622 = vst [vmem:[%s339 + $0x18] sm:$0xff] %v1558
        %1623 = vst [vmem:[%s339 + $0x20] sm:$0xff] %v1559
        %1624 = vst [vmem:[%s339 + $0x28] sm:$0xff] %v1560
        %1625 = vst [vmem:[%s339 + $0x30] sm:$0xff] %v1561
        %1626 = vst [vmem:[%s339 + $0x38] sm:$0xff] %v1562
        %1627 = vst [vmem:[%s339 + $0x40] sm:$0xff] %v1563
        %1628 = vst [vmem:[%s339 + $0x48] sm:$0xff] %v1564
        %1629 = vst [vmem:[%s339 + $0x50] sm:$0xff] %v1565
        %1630 = vst [vmem:[%s339 + $0x58] sm:$0xff] %v1566
        %1631 = vst [vmem:[%s339 + $0x60] sm:$0xff] %v1567
        %1632 = vst [vmem:[%s339 + $0x68] sm:$0xff] %v1568
        %1633 = vst [vmem:[%s339 + $0x70] sm:$0xff] %v1569
        %1634 = vst [vmem:[%s339 + $0x78] sm:$0xff] %v1570
        %1635 = vst [vmem:[%s339 + $0x80] sm:$0xff] %v1571
        %1636 = vst [vmem:[%s339 + $0x88] sm:$0xff] %v1572
        %1637 = vst [vmem:[%s339 + $0x90] sm:$0xff] %v1573
        %1638 = vst [vmem:[%s339 + $0x98] sm:$0xff] %v1574
        %1639 = vst [vmem:[%s339 + $0xa0] sm:$0xff] %v1575
        %1640 = vst [vmem:[%s339 + $0xa8] sm:$0xff] %v1576
        %1641 = vst [vmem:[%s339 + $0xb0] sm:$0xff] %v1577
        %1642 = vst [vmem:[%s339 + $0xb8] sm:$0xff] %v1578
        %1643 = vst [vmem:[%s339 + $0xc0] sm:$0xff] %v1579
        %1644 = vst [vmem:[%s339 + $0xc8] sm:$0xff] %v1580
        %1645 = vst [vmem:[%s339 + $0xd0] sm:$0xff] %v1581
        %1646 = vst [vmem:[%s339 + $0xd8] sm:$0xff] %v1582
        %1647 = vst [vmem:[%s339 + $0xe0] sm:$0xff] %v1583
        %1648 = vst [vmem:[%s339 + $0xe8] sm:$0xff] %v1584
        %1649 = vst [vmem:[%s339 + $0xf0] sm:$0xff] %v1585
        %1650 = vst [vmem:[%s339 + $0xf8] sm:$0xff] %v1586
        %1651 = vst [vmem:[%s339 + $0x100] sm:$0xff] %v1587
        %1652 = vst [vmem:[%s339 + $0x108] sm:$0xff] %v1588
        %1653 = vst [vmem:[%s339 + $0x110] sm:$0xff] %v1589
        %1654 = vst [vmem:[%s339 + $0x118] sm:$0xff] %v1590
        %1655 = vst [vmem:[%s339 + $0x120] sm:$0xff] %v1591
        %1656 = vst [vmem:[%s339 + $0x128] sm:$0xff] %v1592
        %1657 = vst [vmem:[%s339 + $0x130] sm:$0xff] %v1593
        %1658 = vst [vmem:[%s339 + $0x138] sm:$0xff] %v1594
        %1659 = vst [vmem:[%s339 + $0x140] sm:$0xff] %v1595
        %1660 = vst [vmem:[%s339 + $0x148] sm:$0xff] %v1596
        %1661 = vst [vmem:[%s339 + $0x150] sm:$0xff] %v1597
        %1662 = vst [vmem:[%s339 + $0x158] sm:$0xff] %v1598
        %1663 = vst [vmem:[%s339 + $0x160] sm:$0xff] %v1599
        %1664 = vst [vmem:[%s339 + $0x168] sm:$0xff] %v1600
        %1665 = vst [vmem:[%s339 + $0x170] sm:$0xff] %v1601
        %1666 = vst [vmem:[%s339 + $0x178] sm:$0xff] %v1602
        %1667 = vst [vmem:[%s339 + $0x180] sm:$0xff] %v1603
        %1668 = vst [vmem:[%s339 + $0x188] sm:$0xff] %v1604
        %1669 = vst [vmem:[%s339 + $0x190] sm:$0xff] %v1605
        %1670 = vst [vmem:[%s339 + $0x198] sm:$0xff] %v1606
        %1671 = vst [vmem:[%s339 + $0x1a0] sm:$0xff] %v1607
        %1672 = vst [vmem:[%s339 + $0x1a8] sm:$0xff] %v1608
        %1673 = vst [vmem:[%s339 + $0x1b0] sm:$0xff] %v1609
        %1674 = vst [vmem:[%s339 + $0x1b8] sm:$0xff] %v1610
        %1675 = vst [vmem:[%s339 + $0x1c0] sm:$0xff] %v1611
        %1676 = vst [vmem:[%s339 + $0x1c8] sm:$0xff] %v1612
        %1677 = vst [vmem:[%s339 + $0x1d0] sm:$0xff] %v1613
        %1678 = vst [vmem:[%s339 + $0x1d8] sm:$0xff] %v1614
        %1679 = vst [vmem:[%s339 + $0x1e0] sm:$0xff] %v1615
        %1680 = vst [vmem:[%s339 + $0x1e8] sm:$0xff] %v1616
        %1681 = vst [vmem:[%s339 + $0x1f0] sm:$0xff] %v1617
        %1682 = vst [vmem:[%s339 + $0x1f8] sm:$0xff] %v1618
      $region48: #{matmul_fused.1} parent=39 // pred_fallthru
        _
      %s1683 = smul.u32 64, %s21
      %p1684 = scmp.lt.s32.totalorder %s1683, 255
      %s1685 = scalar_select %p1684, %s1683, 255
      %p1686 = scmp.lt.s32.totalorder %s22, 0
      %s1687 = scalar_select %p1686, %s22, 0
      %s1688 = sadd.s32 %s1687, %s1685
      %s1689 = smul.addr %s1688, 8
      %s1690 = scalar_lea.vmem %s5, %s1689
      // Predicated region
      $region49: #{matmul_fused.1} parent=39 // pred_check
        %p1691 = pneg %p189
      $region50: #{matmul_fused.1} parent=39 // pred_check_branch
        %1693 = sbr.rel (%p1691) target = $region52
      $region51: #{matmul_fused.1} parent=39 // pred_region
        %s1694 = smul.u32 64, %s21
      $region52: #{matmul_fused.1} parent=39 // pred_fallthru
        _
    $region40: #{matmul_fused.1} parent=5 // pred_fallthru
      _
    %p1695 = scmp.le.s32.totalorder 2, %s11
    // Predicated region
    $region53: #{matmul_fused.1} parent=5 // pred_check
      %p1696 = pneg %p1695
    $region54: #{matmul_fused.1} parent=5 // pred_check_branch
      %1698 = sbr.rel (%p1696) target = $region56
    $region55: #{matmul_fused.1} parent=5 // pred_region
      %s1699 = ssub.s32 %s11, 2
      // Predicated region
      $region57: #{matmul_fused.1} parent=55 // pred_check
        %p1700 = pneg %p195
      $region58: #{matmul_fused.1} parent=55 // pred_check_branch
        %1702 = sbr.rel (%p1700) target = $region60
      $region59: #{matmul_fused.1} parent=55 // pred_region
        %s1703 = smul.u32 64, %s24
        %p1704 = scmp.lt.s32.totalorder %s1703, 255
        %s1705 = scalar_select %p1704, %s1703, 255
        %p1706 = scmp.lt.s32.totalorder %s25, 0
        %s1707 = scalar_select %p1706, %s25, 0
        %s1708 = sadd.s32 %s1707, %s1705
        %s1709 = smul.addr %s1708, 8
        %s1710 = scalar_lea.vmem %s5, %s1709
      $region60: #{matmul_fused.1} parent=55 // pred_fallthru
        _
    $region56: #{matmul_fused.1} parent=5 // pred_fallthru
      _
  $region6: #{matmul_fused.1} parent=0 // loop_footer
    %s15 = sadd.s32 1, %s11
  $region7: #{matmul_fused.1} parent=0 // loop_footer_branch
    %10 = sbr.rel target = $region3
  $region8: #{matmul_fused.1} parent=0 // loop_exit
    _

</llo_original>
